<compile_context>
chip_gen: v6e
topology: v6e:2x2x1
jax: 0.10.0
libtpu: 0.0.40
codegen_flags: <defaults>
</compile_context>

<pallas_src>
import math
from functools import partial

import jax
import jax.numpy as jnp
from jax import lax
from jax.experimental import pallas as pl
from jax.experimental.pallas import tpu as pltpu


def mha_kernel(x_ref, wq_ref, bq_ref, wk_ref, bk_ref, wv_ref, bv_ref,
               wc_ref, bc_ref, o_ref, cat_ref, *, n_head):
    """One batch element per grid step.

    x_ref:   (1, T, D)  activations (f32 or bf16)
    w*_ref:  (D, D)     right-multiply weights (W.T); scale folded into w_q
    b*_ref:  (1, D)     biases (f32)
    o_ref:   (1, T, D)  output
    cat_ref: (T, D) f32 scratch holding the concatenated head outputs
    """
    T, D = x_ref.shape[1], x_ref.shape[2]
    d_k = D // n_head

    x = x_ref[0]                                                    # (T, D)

    # --- Wide projections: one N=D, K=D MXU matmul each, f32 accumulation. ---
    q = jnp.dot(x, wq_ref[...], preferred_element_type=jnp.float32) + bq_ref[...]
    k = jnp.dot(x, wk_ref[...], preferred_element_type=jnp.float32) + bk_ref[...]
    v = jnp.dot(x, wv_ref[...], preferred_element_type=jnp.float32) + bv_ref[...]

    # --- Per-head attention core (~3% of FLOPs): static loop over 16-lane
    #     slices of the lane-dense q/k/v. 1/sqrt(d_k) already folded into q. ---
    for h in range(n_head):
        lo = h * d_k
        qh = q[:, lo:lo + d_k]                                      # (T, d_k)
        kh = k[:, lo:lo + d_k]
        vh = v[:, lo:lo + d_k]
        # scores = qh @ kh^T (contract the shared d_k axis, no explicit .T).
        s = lax.dot_general(qh, kh, (((1,), (1,)), ((), ())),
                            preferred_element_type=jnp.float32)     # (T, T)
        # TODO(synk): mask path omitted — forward defaults to mask=None and the
        # PyTorch code uses a non-inplace masked_fill (a no-op on `scores`).
        s_max = jnp.max(s, axis=-1, keepdims=True)
        e = jnp.exp(s - s_max)
        denom = jnp.sum(e, axis=-1, keepdims=True)
        p = e * pl.reciprocal(denom, approx=True)                   # softmax (f32)
        oh = jnp.dot(p, vh, preferred_element_type=jnp.float32)     # (T, d_k)
        cat_ref[:, lo:lo + d_k] = oh                                # build concat

    # --- Single wide combine matmul: head summation happens inside the
    #     K = H*d_k = D contraction on the MXU (no VPU add-tree, no concat op).
    cat = cat_ref[...].astype(wc_ref.dtype)                         # (T, D)
    y = jnp.dot(cat, wc_ref[...], preferred_element_type=jnp.float32) + bc_ref[...]
    o_ref[0] = y.astype(o_ref.dtype)


def multi_head_attention(x, params, n_head, mxu_dtype=jnp.bfloat16):
    """x: (B, T, D); params = (wq, bq, wk, bk, wv, bv, wc, bc) with PyTorch
    nn.Linear layout W: (out, in), b: (out,).

    mxu_dtype: operand dtype for the MXU matmuls (accumulation stays f32).
    bf16 is ~3x matmul throughput on v6e/v7x; pass None for exact f32 parity
    with the float32 PyTorch module.
    """
    B, T, D = x.shape
    assert D % n_head == 0
    d_k = D // n_head
    out_dtype = x.dtype
    wq, bq, wk, bk, wv, bv, wc, bc = params
    scale = 1.0 / math.sqrt(d_k)

    # nn.Linear computes y = x @ W.T + b -> pass W.T as the right operand.
    # Fold the 1/sqrt(d_k) attention scale into the query projection (free).
    wq_t = wq.T * scale
    wk_t = wk.T
    wv_t = wv.T
    wc_t = wc.T
    bq_r = (bq * scale).reshape(1, D).astype(jnp.float32)
    bk_r = bk.reshape(1, D).astype(jnp.float32)
    bv_r = bv.reshape(1, D).astype(jnp.float32)
    bc_r = bc.reshape(1, D).astype(jnp.float32)

    if mxu_dtype is not None:
        # Narrow MXU operands; biases / softmax / accumulation stay f32.
        x = x.astype(mxu_dtype)
        wq_t, wk_t, wv_t, wc_t = tuple(
            w.astype(mxu_dtype) for w in (wq_t, wk_t, wv_t, wc_t))

    def resident(shape):   # whole array in VMEM, same block every grid step
        return pl.BlockSpec(shape, lambda b: (0,) * len(shape))

    return pl.pallas_call(
        partial(mha_kernel, n_head=n_head),
        out_shape=jax.ShapeDtypeStruct((B, T, D), out_dtype),
        grid=(B,),
        in_specs=[pl.BlockSpec((1, T, D), lambda b: (b, 0, 0)),
                  resident((D, D)), resident((1, D)),     # w_q (scaled), b_q
                  resident((D, D)), resident((1, D)),     # w_k, b_k
                  resident((D, D)), resident((1, D)),     # w_v, b_v
                  resident((D, D)), resident((1, D))],    # combine
        out_specs=pl.BlockSpec((1, T, D), lambda b: (b, 0, 0)),
        scratch_shapes=[pltpu.VMEM((T, D), jnp.float32)],
        compiler_params=pltpu.CompilerParams(
            dimension_semantics=("parallel",)),   # shards batch across v7x's 2 TCs
    )(x, wq_t, bq_r, wk_t, bk_r, wv_t, bv_r, wc_t, bc_r)


if __name__ == "__main__":
    B, T, D, H = 2, 8, 128, 8          # batch, seq, n_dim, n_head (d_k = 16)

    key = jax.random.PRNGKey(0)
    ks = jax.random.split(key, 9)
    bound = 1.0 / math.sqrt(D)          # PyTorch nn.Linear default init range

    def init(k, shape):
        return jax.random.uniform(k, shape, jnp.float32, -bound, bound)

    wq, bq = init(ks[0], (D, D)), init(ks[1], (D,))
    wk, bk = init(ks[2], (D, D)), init(ks[3], (D,))
    wv, bv = init(ks[4], (D, D)), init(ks[5], (D,))
    wc, bc = init(ks[6], (D, D)), init(ks[7], (D,))
    x = jax.random.normal(ks[8], (B, T, D), jnp.float32)
    params = (wq, bq, wk, bk, wv, bv, wc, bc)

    # pure-JAX reference (mirrors the PyTorch forward exactly)
    def ref(x):
        q = x @ wq.T + bq
        k = x @ wk.T + bk
        v = x @ wv.T + bv
        d_k = D // H
        qh = q.reshape(B, T, H, d_k).transpose(0, 2, 1, 3)
        kh = k.reshape(B, T, H, d_k).transpose(0, 2, 1, 3)
        vh = v.reshape(B, T, H, d_k).transpose(0, 2, 1, 3)
        s = jnp.einsum('bhtd,bhsd->bhts', qh, kh,
                       precision=jax.lax.Precision.HIGHEST) / math.sqrt(d_k)
        p = jax.nn.softmax(s, axis=-1)
        o = jnp.einsum('bhts,bhsd->bhtd', p, vh,
                       precision=jax.lax.Precision.HIGHEST)
        o = o.transpose(0, 2, 1, 3).reshape(B, T, D)
        return o @ wc.T + bc

    r = jax.block_until_ready(ref(x))

    # 1) f32-operand path: tight parity with the float32 PyTorch module.
    out_f32 = jax.block_until_ready(
        multi_head_attention(x, params, H, mxu_dtype=None))
    assert out_f32.shape == (B, T, D)
    assert jnp.allclose(out_f32, r, atol=2e-3, rtol=2e-3), \
        f"f32 max abs diff {jnp.max(jnp.abs(out_f32 - r))}"

    # 2) default fast path (bf16 MXU operands, f32 accumulation & softmax).
    out_bf16 = jax.block_until_ready(multi_head_attention(x, params, H))
    assert out_bf16.shape == (B, T, D)
    assert jnp.allclose(out_bf16, r, atol=3e-2, rtol=3e-2), \
        f"bf16 max abs diff {jnp.max(jnp.abs(out_bf16 - r))}"

    print("KERNEL_OK")
</pallas_src>

<mosaic_0001>
module attributes {stable_mosaic.version = 11 : i64} {
  func.func @mha_kernel(%arg0: i32, %arg1: memref<1x8x128xf32, #tpu.memory_space<vmem>>, %arg2: memref<128x128xf32, #tpu.memory_space<vmem>>, %arg3: memref<1x128xf32, #tpu.memory_space<vmem>>, %arg4: memref<128x128xf32, #tpu.memory_space<vmem>>, %arg5: memref<1x128xf32, #tpu.memory_space<vmem>>, %arg6: memref<128x128xf32, #tpu.memory_space<vmem>>, %arg7: memref<1x128xf32, #tpu.memory_space<vmem>>, %arg8: memref<128x128xf32, #tpu.memory_space<vmem>>, %arg9: memref<1x128xf32, #tpu.memory_space<vmem>>, %arg10: memref<1x8x128xf32, #tpu.memory_space<vmem>>, %arg11: memref<8x128xf32, #tpu.memory_space<vmem>>) attributes {dimension_semantics = [#tpu.dimension_semantics<parallel>], iteration_bounds = array<i64: 2>, scalar_prefetch = 0 : i64, scratch_operands = 1 : i64, tpu.core_type = #tpu.core_type<tc>, window_params = [{transform_indices = @transform_0, window_bounds = array<i64: 1, 8, 128>}, {pipeline_mode = #tpu.pipeline_mode<synchronous>, transform_indices = @transform_1, window_bounds = array<i64: 128, 128>}, {pipeline_mode = #tpu.pipeline_mode<synchronous>, transform_indices = @transform_2, window_bounds = array<i64: 1, 128>}, {pipeline_mode = #tpu.pipeline_mode<synchronous>, transform_indices = @transform_3, window_bounds = array<i64: 128, 128>}, {pipeline_mode = #tpu.pipeline_mode<synchronous>, transform_indices = @transform_4, window_bounds = array<i64: 1, 128>}, {pipeline_mode = #tpu.pipeline_mode<synchronous>, transform_indices = @transform_5, window_bounds = array<i64: 128, 128>}, {pipeline_mode = #tpu.pipeline_mode<synchronous>, transform_indices = @transform_6, window_bounds = array<i64: 1, 128>}, {pipeline_mode = #tpu.pipeline_mode<synchronous>, transform_indices = @transform_7, window_bounds = array<i64: 128, 128>}, {pipeline_mode = #tpu.pipeline_mode<synchronous>, transform_indices = @transform_8, window_bounds = array<i64: 1, 128>}, {transform_indices = @transform_9, window_bounds = array<i64: 1, 8, 128>}]} {
    %c0 = arith.constant 0 : index
    %c0_0 = arith.constant 0 : index
    %c0_1 = arith.constant 0 : index
    %0 = vector.load %arg1[%c0, %c0_0, %c0_1] : memref<1x8x128xf32, #tpu.memory_space<vmem>>, vector<1x8x128xf32>
    %1 = vector.shape_cast %0 : vector<1x8x128xf32> to vector<8x128xf32>
    %c0_2 = arith.constant 0 : index
    %c0_3 = arith.constant 0 : index
    %2 = vector.load %arg2[%c0_2, %c0_3] : memref<128x128xf32, #tpu.memory_space<vmem>>, vector<128x128xf32>
    %cst = arith.constant dense<0.000000e+00> : vector<8x128xf32>
    %3 = tpu.matmul %1, %2, %cst {dimension_numbers = #tpu.dot_dimension_numbers<[1], [0], [0], [1], [0, 0, 1, 1], [], []>} : vector<8x128xf32>, vector<128x128xf32>, vector<8x128xf32> -> vector<8x128xf32>
    %c0_4 = arith.constant 0 : index
    %c0_5 = arith.constant 0 : index
    %4 = vector.load %arg3[%c0_4, %c0_5] : memref<1x128xf32, #tpu.memory_space<vmem>>, vector<1x128xf32>
    %5 = vector.broadcast %4 : vector<1x128xf32> to vector<8x128xf32>
    %6 = arith.addf %3, %5 : vector<8x128xf32>
    %c0_6 = arith.constant 0 : index
    %c0_7 = arith.constant 0 : index
    %7 = vector.load %arg4[%c0_6, %c0_7] : memref<128x128xf32, #tpu.memory_space<vmem>>, vector<128x128xf32>
    %cst_8 = arith.constant dense<0.000000e+00> : vector<8x128xf32>
    %8 = tpu.matmul %1, %7, %cst_8 {dimension_numbers = #tpu.dot_dimension_numbers<[1], [0], [0], [1], [0, 0, 1, 1], [], []>} : vector<8x128xf32>, vector<128x128xf32>, vector<8x128xf32> -> vector<8x128xf32>
    %c0_9 = arith.constant 0 : index
    %c0_10 = arith.constant 0 : index
    %9 = vector.load %arg5[%c0_9, %c0_10] : memref<1x128xf32, #tpu.memory_space<vmem>>, vector<1x128xf32>
    %10 = vector.broadcast %9 : vector<1x128xf32> to vector<8x128xf32>
    %11 = arith.addf %8, %10 : vector<8x128xf32>
    %c0_11 = arith.constant 0 : index
    %c0_12 = arith.constant 0 : index
    %12 = vector.load %arg6[%c0_11, %c0_12] : memref<128x128xf32, #tpu.memory_space<vmem>>, vector<128x128xf32>
    %cst_13 = arith.constant dense<0.000000e+00> : vector<8x128xf32>
    %13 = tpu.matmul %1, %12, %cst_13 {dimension_numbers = #tpu.dot_dimension_numbers<[1], [0], [0], [1], [0, 0, 1, 1], [], []>} : vector<8x128xf32>, vector<128x128xf32>, vector<8x128xf32> -> vector<8x128xf32>
    %c0_14 = arith.constant 0 : index
    %c0_15 = arith.constant 0 : index
    %14 = vector.load %arg7[%c0_14, %c0_15] : memref<1x128xf32, #tpu.memory_space<vmem>>, vector<1x128xf32>
    %15 = vector.broadcast %14 : vector<1x128xf32> to vector<8x128xf32>
    %16 = arith.addf %13, %15 : vector<8x128xf32>
    %17 = vector.extract_strided_slice %6 {offsets = [0, 0], sizes = [8, 16], strides = [1, 1]} : vector<8x128xf32> to vector<8x16xf32>
    %18 = vector.extract_strided_slice %11 {offsets = [0, 0], sizes = [8, 16], strides = [1, 1]} : vector<8x128xf32> to vector<8x16xf32>
    %19 = vector.extract_strided_slice %16 {offsets = [0, 0], sizes = [8, 16], strides = [1, 1]} : vector<8x128xf32> to vector<8x16xf32>
    %cst_16 = arith.constant dense<0.000000e+00> : vector<8x8xf32>
    %20 = tpu.matmul %17, %18, %cst_16 {dimension_numbers = #tpu.dot_dimension_numbers<[1], [1], [0], [0], [0, 0, 1, 0], [], []>} : vector<8x16xf32>, vector<8x16xf32>, vector<8x8xf32> -> vector<8x8xf32>
    %cst_17 = arith.constant dense<0xFF800000> : vector<8xf32>
    %21 = vector.multi_reduction <maximumf>, %20, %cst_17 [1] : vector<8x8xf32> to vector<8xf32>
    %22 = vector.shape_cast %21 : vector<8xf32> to vector<8x1xf32>
    %23 = vector.broadcast %22 : vector<8x1xf32> to vector<8x8xf32>
    %24 = arith.subf %20, %23 : vector<8x8xf32>
    %25 = math.exp %24 : vector<8x8xf32>
    %cst_18 = arith.constant dense<0.000000e+00> : vector<8xf32>
    %26 = vector.multi_reduction <add>, %25, %cst_18 [1] : vector<8x8xf32> to vector<8xf32>
    %27 = vector.shape_cast %26 : vector<8xf32> to vector<8x1xf32>
    %28 = tpu.reciprocal %27 {approx = true} : vector<8x1xf32> -> vector<8x1xf32>
    %29 = vector.broadcast %28 : vector<8x1xf32> to vector<8x8xf32>
    %30 = arith.mulf %25, %29 : vector<8x8xf32>
    %cst_19 = arith.constant dense<0.000000e+00> : vector<8x16xf32>
    %31 = tpu.matmul %30, %19, %cst_19 {dimension_numbers = #tpu.dot_dimension_numbers<[1], [0], [0], [1], [0, 0, 1, 1], [], []>} : vector<8x8xf32>, vector<8x16xf32>, vector<8x16xf32> -> vector<8x16xf32>
    %c0_20 = arith.constant 0 : index
    %c0_21 = arith.constant 0 : index
    %32 = vector.load %arg11[%c0_20, %c0_21] : memref<8x128xf32, #tpu.memory_space<vmem>>, vector<8x16xf32>
    tpu.vector_store %arg11[%c0_20, %c0_21], %31 {strides = array<i32>} : memref<8x128xf32, #tpu.memory_space<vmem>>, vector<8x16xf32>,
    %33 = vector.extract_strided_slice %6 {offsets = [0, 16], sizes = [8, 16], strides = [1, 1]} : vector<8x128xf32> to vector<8x16xf32>
    %34 = vector.extract_strided_slice %11 {offsets = [0, 16], sizes = [8, 16], strides = [1, 1]} : vector<8x128xf32> to vector<8x16xf32>
    %35 = vector.extract_strided_slice %16 {offsets = [0, 16], sizes = [8, 16], strides = [1, 1]} : vector<8x128xf32> to vector<8x16xf32>
    %cst_22 = arith.constant dense<0.000000e+00> : vector<8x8xf32>
    %36 = tpu.matmul %33, %34, %cst_22 {dimension_numbers = #tpu.dot_dimension_numbers<[1], [1], [0], [0], [0, 0, 1, 0], [], []>} : vector<8x16xf32>, vector<8x16xf32>, vector<8x8xf32> -> vector<8x8xf32>
    %cst_23 = arith.constant dense<0xFF800000> : vector<8xf32>
    %37 = vector.multi_reduction <maximumf>, %36, %cst_23 [1] : vector<8x8xf32> to vector<8xf32>
    %38 = vector.shape_cast %37 : vector<8xf32> to vector<8x1xf32>
    %39 = vector.broadcast %38 : vector<8x1xf32> to vector<8x8xf32>
    %40 = arith.subf %36, %39 : vector<8x8xf32>
    %41 = math.exp %40 : vector<8x8xf32>
    %cst_24 = arith.constant dense<0.000000e+00> : vector<8xf32>
    %42 = vector.multi_reduction <add>, %41, %cst_24 [1] : vector<8x8xf32> to vector<8xf32>
    %43 = vector.shape_cast %42 : vector<8xf32> to vector<8x1xf32>
    %44 = tpu.reciprocal %43 {approx = true} : vector<8x1xf32> -> vector<8x1xf32>
    %45 = vector.broadcast %44 : vector<8x1xf32> to vector<8x8xf32>
    %46 = arith.mulf %41, %45 : vector<8x8xf32>
    %cst_25 = arith.constant dense<0.000000e+00> : vector<8x16xf32>
    %47 = tpu.matmul %46, %35, %cst_25 {dimension_numbers = #tpu.dot_dimension_numbers<[1], [0], [0], [1], [0, 0, 1, 1], [], []>} : vector<8x8xf32>, vector<8x16xf32>, vector<8x16xf32> -> vector<8x16xf32>
    %c0_26 = arith.constant 0 : index
    %c16 = arith.constant 16 : index
    %48 = vector.load %arg11[%c0_26, %c16] : memref<8x128xf32, #tpu.memory_space<vmem>>, vector<8x16xf32>
    tpu.vector_store %arg11[%c0_26, %c16], %47 {strides = array<i32>} : memref<8x128xf32, #tpu.memory_space<vmem>>, vector<8x16xf32>,
    %49 = vector.extract_strided_slice %6 {offsets = [0, 32], sizes = [8, 16], strides = [1, 1]} : vector<8x128xf32> to vector<8x16xf32>
    %50 = vector.extract_strided_slice %11 {offsets = [0, 32], sizes = [8, 16], strides = [1, 1]} : vector<8x128xf32> to vector<8x16xf32>
    %51 = vector.extract_strided_slice %16 {offsets = [0, 32], sizes = [8, 16], strides = [1, 1]} : vector<8x128xf32> to vector<8x16xf32>
    %cst_27 = arith.constant dense<0.000000e+00> : vector<8x8xf32>
    %52 = tpu.matmul %49, %50, %cst_27 {dimension_numbers = #tpu.dot_dimension_numbers<[1], [1], [0], [0], [0, 0, 1, 0], [], []>} : vector<8x16xf32>, vector<8x16xf32>, vector<8x8xf32> -> vector<8x8xf32>
    %cst_28 = arith.constant dense<0xFF800000> : vector<8xf32>
    %53 = vector.multi_reduction <maximumf>, %52, %cst_28 [1] : vector<8x8xf32> to vector<8xf32>
    %54 = vector.shape_cast %53 : vector<8xf32> to vector<8x1xf32>
    %55 = vector.broadcast %54 : vector<8x1xf32> to vector<8x8xf32>
    %56 = arith.subf %52, %55 : vector<8x8xf32>
    %57 = math.exp %56 : vector<8x8xf32>
    %cst_29 = arith.constant dense<0.000000e+00> : vector<8xf32>
    %58 = vector.multi_reduction <add>, %57, %cst_29 [1] : vector<8x8xf32> to vector<8xf32>
    %59 = vector.shape_cast %58 : vector<8xf32> to vector<8x1xf32>
    %60 = tpu.reciprocal %59 {approx = true} : vector<8x1xf32> -> vector<8x1xf32>
    %61 = vector.broadcast %60 : vector<8x1xf32> to vector<8x8xf32>
    %62 = arith.mulf %57, %61 : vector<8x8xf32>
    %cst_30 = arith.constant dense<0.000000e+00> : vector<8x16xf32>
    %63 = tpu.matmul %62, %51, %cst_30 {dimension_numbers = #tpu.dot_dimension_numbers<[1], [0], [0], [1], [0, 0, 1, 1], [], []>} : vector<8x8xf32>, vector<8x16xf32>, vector<8x16xf32> -> vector<8x16xf32>
    %c0_31 = arith.constant 0 : index
    %c32 = arith.constant 32 : index
    %64 = vector.load %arg11[%c0_31, %c32] : memref<8x128xf32, #tpu.memory_space<vmem>>, vector<8x16xf32>
    tpu.vector_store %arg11[%c0_31, %c32], %63 {strides = array<i32>} : memref<8x128xf32, #tpu.memory_space<vmem>>, vector<8x16xf32>,
    %65 = vector.extract_strided_slice %6 {offsets = [0, 48], sizes = [8, 16], strides = [1, 1]} : vector<8x128xf32> to vector<8x16xf32>
    %66 = vector.extract_strided_slice %11 {offsets = [0, 48], sizes = [8, 16], strides = [1, 1]} : vector<8x128xf32> to vector<8x16xf32>
    %67 = vector.extract_strided_slice %16 {offsets = [0, 48], sizes = [8, 16], strides = [1, 1]} : vector<8x128xf32> to vector<8x16xf32>
    %cst_32 = arith.constant dense<0.000000e+00> : vector<8x8xf32>
    %68 = tpu.matmul %65, %66, %cst_32 {dimension_numbers = #tpu.dot_dimension_numbers<[1], [1], [0], [0], [0, 0, 1, 0], [], []>} : vector<8x16xf32>, vector<8x16xf32>, vector<8x8xf32> -> vector<8x8xf32>
    %cst_33 = arith.constant dense<0xFF800000> : vector<8xf32>
    %69 = vector.multi_reduction <maximumf>, %68, %cst_33 [1] : vector<8x8xf32> to vector<8xf32>
    %70 = vector.shape_cast %69 : vector<8xf32> to vector<8x1xf32>
    %71 = vector.broadcast %70 : vector<8x1xf32> to vector<8x8xf32>
    %72 = arith.subf %68, %71 : vector<8x8xf32>
    %73 = math.exp %72 : vector<8x8xf32>
    %cst_34 = arith.constant dense<0.000000e+00> : vector<8xf32>
    %74 = vector.multi_reduction <add>, %73, %cst_34 [1] : vector<8x8xf32> to vector<8xf32>
    %75 = vector.shape_cast %74 : vector<8xf32> to vector<8x1xf32>
    %76 = tpu.reciprocal %75 {approx = true} : vector<8x1xf32> -> vector<8x1xf32>
    %77 = vector.broadcast %76 : vector<8x1xf32> to vector<8x8xf32>
    %78 = arith.mulf %73, %77 : vector<8x8xf32>
    %cst_35 = arith.constant dense<0.000000e+00> : vector<8x16xf32>
    %79 = tpu.matmul %78, %67, %cst_35 {dimension_numbers = #tpu.dot_dimension_numbers<[1], [0], [0], [1], [0, 0, 1, 1], [], []>} : vector<8x8xf32>, vector<8x16xf32>, vector<8x16xf32> -> vector<8x16xf32>
    %c0_36 = arith.constant 0 : index
    %c48 = arith.constant 48 : index
    %80 = vector.load %arg11[%c0_36, %c48] : memref<8x128xf32, #tpu.memory_space<vmem>>, vector<8x16xf32>
    tpu.vector_store %arg11[%c0_36, %c48], %79 {strides = array<i32>} : memref<8x128xf32, #tpu.memory_space<vmem>>, vector<8x16xf32>,
    %81 = vector.extract_strided_slice %6 {offsets = [0, 64], sizes = [8, 16], strides = [1, 1]} : vector<8x128xf32> to vector<8x16xf32>
    %82 = vector.extract_strided_slice %11 {offsets = [0, 64], sizes = [8, 16], strides = [1, 1]} : vector<8x128xf32> to vector<8x16xf32>
    %83 = vector.extract_strided_slice %16 {offsets = [0, 64], sizes = [8, 16], strides = [1, 1]} : vector<8x128xf32> to vector<8x16xf32>
    %cst_37 = arith.constant dense<0.000000e+00> : vector<8x8xf32>
    %84 = tpu.matmul %81, %82, %cst_37 {dimension_numbers = #tpu.dot_dimension_numbers<[1], [1], [0], [0], [0, 0, 1, 0], [], []>} : vector<8x16xf32>, vector<8x16xf32>, vector<8x8xf32> -> vector<8x8xf32>
    %cst_38 = arith.constant dense<0xFF800000> : vector<8xf32>
    %85 = vector.multi_reduction <maximumf>, %84, %cst_38 [1] : vector<8x8xf32> to vector<8xf32>
    %86 = vector.shape_cast %85 : vector<8xf32> to vector<8x1xf32>
    %87 = vector.broadcast %86 : vector<8x1xf32> to vector<8x8xf32>
    %88 = arith.subf %84, %87 : vector<8x8xf32>
    %89 = math.exp %88 : vector<8x8xf32>
    %cst_39 = arith.constant dense<0.000000e+00> : vector<8xf32>
    %90 = vector.multi_reduction <add>, %89, %cst_39 [1] : vector<8x8xf32> to vector<8xf32>
    %91 = vector.shape_cast %90 : vector<8xf32> to vector<8x1xf32>
    %92 = tpu.reciprocal %91 {approx = true} : vector<8x1xf32> -> vector<8x1xf32>
    %93 = vector.broadcast %92 : vector<8x1xf32> to vector<8x8xf32>
    %94 = arith.mulf %89, %93 : vector<8x8xf32>
    %cst_40 = arith.constant dense<0.000000e+00> : vector<8x16xf32>
    %95 = tpu.matmul %94, %83, %cst_40 {dimension_numbers = #tpu.dot_dimension_numbers<[1], [0], [0], [1], [0, 0, 1, 1], [], []>} : vector<8x8xf32>, vector<8x16xf32>, vector<8x16xf32> -> vector<8x16xf32>
    %c0_41 = arith.constant 0 : index
    %c64 = arith.constant 64 : index
    %96 = vector.load %arg11[%c0_41, %c64] : memref<8x128xf32, #tpu.memory_space<vmem>>, vector<8x16xf32>
    tpu.vector_store %arg11[%c0_41, %c64], %95 {strides = array<i32>} : memref<8x128xf32, #tpu.memory_space<vmem>>, vector<8x16xf32>,
    %97 = vector.extract_strided_slice %6 {offsets = [0, 80], sizes = [8, 16], strides = [1, 1]} : vector<8x128xf32> to vector<8x16xf32>
    %98 = vector.extract_strided_slice %11 {offsets = [0, 80], sizes = [8, 16], strides = [1, 1]} : vector<8x128xf32> to vector<8x16xf32>
    %99 = vector.extract_strided_slice %16 {offsets = [0, 80], sizes = [8, 16], strides = [1, 1]} : vector<8x128xf32> to vector<8x16xf32>
    %cst_42 = arith.constant dense<0.000000e+00> : vector<8x8xf32>
    %100 = tpu.matmul %97, %98, %cst_42 {dimension_numbers = #tpu.dot_dimension_numbers<[1], [1], [0], [0], [0, 0, 1, 0], [], []>} : vector<8x16xf32>, vector<8x16xf32>, vector<8x8xf32> -> vector<8x8xf32>
    %cst_43 = arith.constant dense<0xFF800000> : vector<8xf32>
    %101 = vector.multi_reduction <maximumf>, %100, %cst_43 [1] : vector<8x8xf32> to vector<8xf32>
    %102 = vector.shape_cast %101 : vector<8xf32> to vector<8x1xf32>
    %103 = vector.broadcast %102 : vector<8x1xf32> to vector<8x8xf32>
    %104 = arith.subf %100, %103 : vector<8x8xf32>
    %105 = math.exp %104 : vector<8x8xf32>
    %cst_44 = arith.constant dense<0.000000e+00> : vector<8xf32>
    %106 = vector.multi_reduction <add>, %105, %cst_44 [1] : vector<8x8xf32> to vector<8xf32>
    %107 = vector.shape_cast %106 : vector<8xf32> to vector<8x1xf32>
    %108 = tpu.reciprocal %107 {approx = true} : vector<8x1xf32> -> vector<8x1xf32>
    %109 = vector.broadcast %108 : vector<8x1xf32> to vector<8x8xf32>
    %110 = arith.mulf %105, %109 : vector<8x8xf32>
    %cst_45 = arith.constant dense<0.000000e+00> : vector<8x16xf32>
    %111 = tpu.matmul %110, %99, %cst_45 {dimension_numbers = #tpu.dot_dimension_numbers<[1], [0], [0], [1], [0, 0, 1, 1], [], []>} : vector<8x8xf32>, vector<8x16xf32>, vector<8x16xf32> -> vector<8x16xf32>
    %c0_46 = arith.constant 0 : index
    %c80 = arith.constant 80 : index
    %112 = vector.load %arg11[%c0_46, %c80] : memref<8x128xf32, #tpu.memory_space<vmem>>, vector<8x16xf32>
    tpu.vector_store %arg11[%c0_46, %c80], %111 {strides = array<i32>} : memref<8x128xf32, #tpu.memory_space<vmem>>, vector<8x16xf32>,
    %113 = vector.extract_strided_slice %6 {offsets = [0, 96], sizes = [8, 16], strides = [1, 1]} : vector<8x128xf32> to vector<8x16xf32>
    %114 = vector.extract_strided_slice %11 {offsets = [0, 96], sizes = [8, 16], strides = [1, 1]} : vector<8x128xf32> to vector<8x16xf32>
    %115 = vector.extract_strided_slice %16 {offsets = [0, 96], sizes = [8, 16], strides = [1, 1]} : vector<8x128xf32> to vector<8x16xf32>
    %cst_47 = arith.constant dense<0.000000e+00> : vector<8x8xf32>
    %116 = tpu.matmul %113, %114, %cst_47 {dimension_numbers = #tpu.dot_dimension_numbers<[1], [1], [0], [0], [0, 0, 1, 0], [], []>} : vector<8x16xf32>, vector<8x16xf32>, vector<8x8xf32> -> vector<8x8xf32>
    %cst_48 = arith.constant dense<0xFF800000> : vector<8xf32>
    %117 = vector.multi_reduction <maximumf>, %116, %cst_48 [1] : vector<8x8xf32> to vector<8xf32>
    %118 = vector.shape_cast %117 : vector<8xf32> to vector<8x1xf32>
    %119 = vector.broadcast %118 : vector<8x1xf32> to vector<8x8xf32>
    %120 = arith.subf %116, %119 : vector<8x8xf32>
    %121 = math.exp %120 : vector<8x8xf32>
    %cst_49 = arith.constant dense<0.000000e+00> : vector<8xf32>
    %122 = vector.multi_reduction <add>, %121, %cst_49 [1] : vector<8x8xf32> to vector<8xf32>
    %123 = vector.shape_cast %122 : vector<8xf32> to vector<8x1xf32>
    %124 = tpu.reciprocal %123 {approx = true} : vector<8x1xf32> -> vector<8x1xf32>
    %125 = vector.broadcast %124 : vector<8x1xf32> to vector<8x8xf32>
    %126 = arith.mulf %121, %125 : vector<8x8xf32>
    %cst_50 = arith.constant dense<0.000000e+00> : vector<8x16xf32>
    %127 = tpu.matmul %126, %115, %cst_50 {dimension_numbers = #tpu.dot_dimension_numbers<[1], [0], [0], [1], [0, 0, 1, 1], [], []>} : vector<8x8xf32>, vector<8x16xf32>, vector<8x16xf32> -> vector<8x16xf32>
    %c0_51 = arith.constant 0 : index
    %c96 = arith.constant 96 : index
    %128 = vector.load %arg11[%c0_51, %c96] : memref<8x128xf32, #tpu.memory_space<vmem>>, vector<8x16xf32>
    tpu.vector_store %arg11[%c0_51, %c96], %127 {strides = array<i32>} : memref<8x128xf32, #tpu.memory_space<vmem>>, vector<8x16xf32>,
    %129 = vector.extract_strided_slice %6 {offsets = [0, 112], sizes = [8, 16], strides = [1, 1]} : vector<8x128xf32> to vector<8x16xf32>
    %130 = vector.extract_strided_slice %11 {offsets = [0, 112], sizes = [8, 16], strides = [1, 1]} : vector<8x128xf32> to vector<8x16xf32>
    %131 = vector.extract_strided_slice %16 {offsets = [0, 112], sizes = [8, 16], strides = [1, 1]} : vector<8x128xf32> to vector<8x16xf32>
    %cst_52 = arith.constant dense<0.000000e+00> : vector<8x8xf32>
    %132 = tpu.matmul %129, %130, %cst_52 {dimension_numbers = #tpu.dot_dimension_numbers<[1], [1], [0], [0], [0, 0, 1, 0], [], []>} : vector<8x16xf32>, vector<8x16xf32>, vector<8x8xf32> -> vector<8x8xf32>
    %cst_53 = arith.constant dense<0xFF800000> : vector<8xf32>
    %133 = vector.multi_reduction <maximumf>, %132, %cst_53 [1] : vector<8x8xf32> to vector<8xf32>
    %134 = vector.shape_cast %133 : vector<8xf32> to vector<8x1xf32>
    %135 = vector.broadcast %134 : vector<8x1xf32> to vector<8x8xf32>
    %136 = arith.subf %132, %135 : vector<8x8xf32>
    %137 = math.exp %136 : vector<8x8xf32>
    %cst_54 = arith.constant dense<0.000000e+00> : vector<8xf32>
    %138 = vector.multi_reduction <add>, %137, %cst_54 [1] : vector<8x8xf32> to vector<8xf32>
    %139 = vector.shape_cast %138 : vector<8xf32> to vector<8x1xf32>
    %140 = tpu.reciprocal %139 {approx = true} : vector<8x1xf32> -> vector<8x1xf32>
    %141 = vector.broadcast %140 : vector<8x1xf32> to vector<8x8xf32>
    %142 = arith.mulf %137, %141 : vector<8x8xf32>
    %cst_55 = arith.constant dense<0.000000e+00> : vector<8x16xf32>
    %143 = tpu.matmul %142, %131, %cst_55 {dimension_numbers = #tpu.dot_dimension_numbers<[1], [0], [0], [1], [0, 0, 1, 1], [], []>} : vector<8x8xf32>, vector<8x16xf32>, vector<8x16xf32> -> vector<8x16xf32>
    %c0_56 = arith.constant 0 : index
    %c112 = arith.constant 112 : index
    %144 = vector.load %arg11[%c0_56, %c112] : memref<8x128xf32, #tpu.memory_space<vmem>>, vector<8x16xf32>
    tpu.vector_store %arg11[%c0_56, %c112], %143 {strides = array<i32>} : memref<8x128xf32, #tpu.memory_space<vmem>>, vector<8x16xf32>,
    %c0_57 = arith.constant 0 : index
    %c0_58 = arith.constant 0 : index
    %145 = vector.load %arg11[%c0_57, %c0_58] : memref<8x128xf32, #tpu.memory_space<vmem>>, vector<8x128xf32>
    %c0_59 = arith.constant 0 : index
    %c0_60 = arith.constant 0 : index
    %146 = vector.load %arg8[%c0_59, %c0_60] : memref<128x128xf32, #tpu.memory_space<vmem>>, vector<128x128xf32>
    %cst_61 = arith.constant dense<0.000000e+00> : vector<8x128xf32>
    %147 = tpu.matmul %145, %146, %cst_61 {dimension_numbers = #tpu.dot_dimension_numbers<[1], [0], [0], [1], [0, 0, 1, 1], [], []>} : vector<8x128xf32>, vector<128x128xf32>, vector<8x128xf32> -> vector<8x128xf32>
    %c0_62 = arith.constant 0 : index
    %c0_63 = arith.constant 0 : index
    %148 = vector.load %arg9[%c0_62, %c0_63] : memref<1x128xf32, #tpu.memory_space<vmem>>, vector<1x128xf32>
    %149 = vector.broadcast %148 : vector<1x128xf32> to vector<8x128xf32>
    %150 = arith.addf %147, %149 : vector<8x128xf32>
    %c0_64 = arith.constant 0 : index
    %c0_65 = arith.constant 0 : index
    %c0_66 = arith.constant 0 : index
    %151 = vector.load %arg10[%c0_64, %c0_65, %c0_66] : memref<1x8x128xf32, #tpu.memory_space<vmem>>, vector<1x8x128xf32>
    %152 = vector.shape_cast %151 : vector<1x8x128xf32> to vector<8x128xf32>
    %153 = vector.shape_cast %150 : vector<8x128xf32> to vector<1x8x128xf32>
    tpu.vector_store %arg10[%c0_64, %c0_65, %c0_66], %153 {strides = array<i32>} : memref<1x8x128xf32, #tpu.memory_space<vmem>>, vector<1x8x128xf32>,
    return
  }
  func.func @transform_0(%arg0: i32) -> (i32, i32, i32) {
    %c0_i32 = arith.constant 0 : i32
    %c0_i32_0 = arith.constant 0 : i32
    %c0_i32_1 = arith.constant 0 : i32
    return %arg0, %c0_i32, %c0_i32_0 : i32, i32, i32
  }
  func.func @transform_1(%arg0: i32) -> (i32, i32) {
    %c0_i32 = arith.constant 0 : i32
    %c0_i32_0 = arith.constant 0 : i32
    %c0_i32_1 = arith.constant 0 : i32
    return %c0_i32, %c0_i32_0 : i32, i32
  }
  func.func @transform_2(%arg0: i32) -> (i32, i32) {
    %c0_i32 = arith.constant 0 : i32
    %c0_i32_0 = arith.constant 0 : i32
    %c0_i32_1 = arith.constant 0 : i32
    return %c0_i32, %c0_i32_0 : i32, i32
  }
  func.func @transform_3(%arg0: i32) -> (i32, i32) {
    %c0_i32 = arith.constant 0 : i32
    %c0_i32_0 = arith.constant 0 : i32
    %c0_i32_1 = arith.constant 0 : i32
    return %c0_i32, %c0_i32_0 : i32, i32
  }
  func.func @transform_4(%arg0: i32) -> (i32, i32) {
    %c0_i32 = arith.constant 0 : i32
    %c0_i32_0 = arith.constant 0 : i32
    %c0_i32_1 = arith.constant 0 : i32
    return %c0_i32, %c0_i32_0 : i32, i32
  }
  func.func @transform_5(%arg0: i32) -> (i32, i32) {
    %c0_i32 = arith.constant 0 : i32
    %c0_i32_0 = arith.constant 0 : i32
    %c0_i32_1 = arith.constant 0 : i32
    return %c0_i32, %c0_i32_0 : i32, i32
  }
  func.func @transform_6(%arg0: i32) -> (i32, i32) {
    %c0_i32 = arith.constant 0 : i32
    %c0_i32_0 = arith.constant 0 : i32
    %c0_i32_1 = arith.constant 0 : i32
    return %c0_i32, %c0_i32_0 : i32, i32
  }
  func.func @transform_7(%arg0: i32) -> (i32, i32) {
    %c0_i32 = arith.constant 0 : i32
    %c0_i32_0 = arith.constant 0 : i32
    %c0_i32_1 = arith.constant 0 : i32
    return %c0_i32, %c0_i32_0 : i32, i32
  }
  func.func @transform_8(%arg0: i32) -> (i32, i32) {
    %c0_i32 = arith.constant 0 : i32
    %c0_i32_0 = arith.constant 0 : i32
    %c0_i32_1 = arith.constant 0 : i32
    return %c0_i32, %c0_i32_0 : i32, i32
  }
  func.func @transform_9(%arg0: i32) -> (i32, i32, i32) {
    %c0_i32 = arith.constant 0 : i32
    %c0_i32_0 = arith.constant 0 : i32
    %c0_i32_1 = arith.constant 0 : i32
    return %arg0, %c0_i32, %c0_i32_0 : i32, i32, i32
  }
}

</mosaic_0001>

<llo_original>
// kernel: tpu_custom_call.1
$region0: #{tpu_custom_call.1}
  #allocation0 [shape = 'u32[]', space=smem, size = 0x4, offset = 0x4, fixed_abs, tag = 'smem constant byte address 0x4 - core index']
  #allocation1 [shape = 'u32[144,128]{1,0:T(1,128)}', space=vmem, size = 0x12000, scoped, tag = 'internal scratch']
  #allocation2 [shape = 'f32[8,128]{1,0:T(8,128)}', space=vmem, size = 0x1000, scoped, tag = 'scratch operand']
  %s0 = inlined_call_operand.hbm [shape: f32[2,8,128], index: 0, kind: input, shape index: {}]
  %s1 = inlined_call_operand.hbm [shape: f32[128,128], index: 1, kind: input, shape index: {}]
  %s2 = inlined_call_operand.vmem [shape: f32[1,128], index: 2, kind: input, shape index: {}]
  %s3 = inlined_call_operand.hbm [shape: f32[128,128], index: 3, kind: input, shape index: {}]
  %s4 = inlined_call_operand.vmem [shape: f32[1,128], index: 4, kind: input, shape index: {}]
  %s5 = inlined_call_operand.hbm [shape: f32[128,128], index: 5, kind: input, shape index: {}]
  %s6 = inlined_call_operand.vmem [shape: f32[1,128], index: 6, kind: input, shape index: {}]
  %s7 = inlined_call_operand.hbm [shape: f32[128,128], index: 7, kind: input, shape index: {}]
  %s8 = inlined_call_operand.vmem [shape: f32[1,128], index: 8, kind: input, shape index: {}]
  %s9 = inlined_call_operand.hbm [shape: f32[2,8,128], index: 9, kind: output, shape index: {}]
  %s10 = sld [smem:[#allocation0]]
  $region89: #{tpu_custom_call.1} parent=0
    _
  %s12 = ssub.s32 1, %s10
  %s13 = scalar_select 0, %s12, %s10
  $region1: #{tpu_custom_call.1} parent=0
    #allocation3 [shape = 'u8[8192]{0}', space=vmem, size = 0x2000, scoped, tag = 'input window, operand 0']
    #allocation4 [shape = 's32[2]{0}', space=sflag, size = 0x8, scoped, tag = 'scoped memory for tpu_custom_call.1']
    #allocation5 [shape = 's32[2]{0}', space=sflag, size = 0x8, scoped, tag = 'scoped memory for tpu_custom_call.1']
    #allocation6 [shape = 'u8[65536]{0}', space=vmem, size = 0x10000, scoped, tag = 'input window, operand 1, single buffered']
    #allocation7 [shape = 's32[1]{0}', space=sflag, size = 0x4, scoped, tag = 'scoped memory for tpu_custom_call.1']
    #allocation8 [shape = 'u8[65536]{0}', space=vmem, size = 0x10000, scoped, tag = 'input window, operand 3, single buffered']
    #allocation9 [shape = 'u8[65536]{0}', space=vmem, size = 0x10000, scoped, tag = 'input window, operand 5, single buffered']
    #allocation10 [shape = 's32[1]{0}', space=sflag, size = 0x4, scoped, tag = 'scoped memory for tpu_custom_call.1']
    #allocation11 [shape = 'u8[65536]{0}', space=vmem, size = 0x10000, scoped, tag = 'input window, operand 7, single buffered']
    #allocation12 [shape = 'u8[8192]{0}', space=vmem, size = 0x2000, scoped, tag = 'output window, operand 0']
    %14 = vsyncpa [#allocation4], 0
    %s15 = scalar_lea.sflag [#allocation4], 1
    %16 = vsyncpa %s15, 0
    %17 = vsyncpa [#allocation7], 0
    %18 = vsyncpa [#allocation10], 0
    %19 = vsyncpa [#allocation5], 0
    %s20 = scalar_lea.sflag [#allocation5], 1
    %21 = vsyncpa %s20, 0
    loop: start=0, step=1, limit=4
    $region2: #{tpu_custom_call.1} parent=1 // loop_pre_header
      _
    $region3: #{tpu_custom_call.1} parent=1 // loop_header
      %s23 = sphi 0, %s27
      %p24 = scmp.ge.s32.totalorder %s23, 4
      %s33 = sphi 0, %s35
      %s36 = sphi 0, %s33
      %s37 = sphi 0, %s36
      %s53 = sphi 0, %s37
      %s57 = sphi 0, %s57
      %s59 = sphi 0, %s57
      %s60 = sphi 0, %s59
      %s74 = sphi 0, %s60
      %s78 = sphi 0, %s78
      %s80 = sphi 0, %s78
      %s81 = sphi 0, %s80
      %s95 = sphi 0, %s81
      %s99 = sphi 0, %s99
      %s101 = sphi 0, %s99
      %s102 = sphi 0, %s101
      %s116 = sphi 0, %s102
      %s120 = sphi 0, %s120
      %s122 = sphi 0, %s120
      %s123 = sphi 0, %s122
      %s137 = sphi 0, %s123
      %s141 = sphi 0, %s141
      %s143 = sphi 0, %s141
      %s144 = sphi 0, %s143
      %s158 = sphi 0, %s144
      %s162 = sphi 0, %s162
      %s164 = sphi 0, %s162
      %s165 = sphi 0, %s164
      %s179 = sphi 0, %s165
      %s183 = sphi 0, %s183
      %s185 = sphi 0, %s183
      %s186 = sphi 0, %s185
      %s200 = sphi 0, %s186
      %s204 = sphi 0, %s204
      %s206 = sphi 0, %s204
      %s207 = sphi 0, %s206
      %s221 = sphi 0, %s207
      %s227 = sphi 0, %s229
      %s230 = sphi 0, %s227
      %s231 = sphi 0, %s230
      %s247 = sphi 0, %s231
    $region4: #{tpu_custom_call.1} parent=1 // loop_header_branch
      %26 = sbr.rel (%p24) target = $region8
    $region5: #{tpu_custom_call.1} parent=1 // loop_body
      %s28 = ssub.s32 %s23, 1
      %s29 = ssub.s32 %s23, 2
      %s30 = sadd.s32 %s23, 1
      %s31 = ssub.s32 %s23, %s30
      %p32 = scmp.eq.s32.totalorder %s31, 0
      %s34 = sadd.s32 %s33, 1
      %s35 = scalar_select %p32, %s33, %s34
      %p38 = pneg %p32
      %p39 = scmp.eq.s32.totalorder %s23, 1
      %p40 = por %p38, %p39
      %p41 = scmp.ne.s32.totalorder %s33, %s36
      %p42 = scmp.eq.s32.totalorder %s23, 0
      %p43 = por %p41, %p42
      %p44 = scmp.ne.s32.totalorder %s33, %s36
      %p45 = scmp.eq.s32.totalorder %s28, 1
      %p46 = por %p44, %p45
      %p47 = scmp.ne.s32.totalorder %s36, %s37
      %p48 = scmp.eq.s32.totalorder %s28, 0
      %p49 = por %p47, %p48
      %p50 = scmp.ne.s32.totalorder %s36, %s37
      %p51 = scmp.eq.s32.totalorder %s29, 1
      %p52 = por %p50, %p51
      %p54 = scmp.ne.s32.totalorder %s37, %s53
      %p55 = scmp.eq.s32.totalorder %s29, 0
      %p56 = por %p54, %p55
      %s58 = sadd.s32 %s57, 1
      %p61 = scmp.eq.s32.totalorder %s23, 1
      %p62 = scmp.ne.s32.totalorder %s57, %s59
      %p63 = scmp.eq.s32.totalorder %s23, 0
      %p64 = por %p62, %p63
      %p65 = scmp.ne.s32.totalorder %s57, %s59
      %p66 = scmp.eq.s32.totalorder %s28, 1
      %p67 = por %p65, %p66
      %p68 = scmp.ne.s32.totalorder %s59, %s60
      %p69 = scmp.eq.s32.totalorder %s28, 0
      %p70 = por %p68, %p69
      %p71 = scmp.ne.s32.totalorder %s59, %s60
      %p72 = scmp.eq.s32.totalorder %s29, 1
      %p73 = por %p71, %p72
      %p75 = scmp.ne.s32.totalorder %s60, %s74
      %p76 = scmp.eq.s32.totalorder %s29, 0
      %p77 = por %p75, %p76
      %s79 = sadd.s32 %s78, 1
      %p82 = scmp.eq.s32.totalorder %s23, 1
      %p83 = scmp.ne.s32.totalorder %s78, %s80
      %p84 = scmp.eq.s32.totalorder %s23, 0
      %p85 = por %p83, %p84
      %p86 = scmp.ne.s32.totalorder %s78, %s80
      %p87 = scmp.eq.s32.totalorder %s28, 1
      %p88 = por %p86, %p87
      %p89 = scmp.ne.s32.totalorder %s80, %s81
      %p90 = scmp.eq.s32.totalorder %s28, 0
      %p91 = por %p89, %p90
      %p92 = scmp.ne.s32.totalorder %s80, %s81
      %p93 = scmp.eq.s32.totalorder %s29, 1
      %p94 = por %p92, %p93
      %p96 = scmp.ne.s32.totalorder %s81, %s95
      %p97 = scmp.eq.s32.totalorder %s29, 0
      %p98 = por %p96, %p97
      %s100 = sadd.s32 %s99, 1
      %p103 = scmp.eq.s32.totalorder %s23, 1
      %p104 = scmp.ne.s32.totalorder %s99, %s101
      %p105 = scmp.eq.s32.totalorder %s23, 0
      %p106 = por %p104, %p105
      %p107 = scmp.ne.s32.totalorder %s99, %s101
      %p108 = scmp.eq.s32.totalorder %s28, 1
      %p109 = por %p107, %p108
      %p110 = scmp.ne.s32.totalorder %s101, %s102
      %p111 = scmp.eq.s32.totalorder %s28, 0
      %p112 = por %p110, %p111
      %p113 = scmp.ne.s32.totalorder %s101, %s102
      %p114 = scmp.eq.s32.totalorder %s29, 1
      %p115 = por %p113, %p114
      %p117 = scmp.ne.s32.totalorder %s102, %s116
      %p118 = scmp.eq.s32.totalorder %s29, 0
      %p119 = por %p117, %p118
      %s121 = sadd.s32 %s120, 1
      %p124 = scmp.eq.s32.totalorder %s23, 1
      %p125 = scmp.ne.s32.totalorder %s120, %s122
      %p126 = scmp.eq.s32.totalorder %s23, 0
      %p127 = por %p125, %p126
      %p128 = scmp.ne.s32.totalorder %s120, %s122
      %p129 = scmp.eq.s32.totalorder %s28, 1
      %p130 = por %p128, %p129
      %p131 = scmp.ne.s32.totalorder %s122, %s123
      %p132 = scmp.eq.s32.totalorder %s28, 0
      %p133 = por %p131, %p132
      %p134 = scmp.ne.s32.totalorder %s122, %s123
      %p135 = scmp.eq.s32.totalorder %s29, 1
      %p136 = por %p134, %p135
      %p138 = scmp.ne.s32.totalorder %s123, %s137
      %p139 = scmp.eq.s32.totalorder %s29, 0
      %p140 = por %p138, %p139
      %s142 = sadd.s32 %s141, 1
      %p145 = scmp.eq.s32.totalorder %s23, 1
      %p146 = scmp.ne.s32.totalorder %s141, %s143
      %p147 = scmp.eq.s32.totalorder %s23, 0
      %p148 = por %p146, %p147
      %p149 = scmp.ne.s32.totalorder %s141, %s143
      %p150 = scmp.eq.s32.totalorder %s28, 1
      %p151 = por %p149, %p150
      %p152 = scmp.ne.s32.totalorder %s143, %s144
      %p153 = scmp.eq.s32.totalorder %s28, 0
      %p154 = por %p152, %p153
      %p155 = scmp.ne.s32.totalorder %s143, %s144
      %p156 = scmp.eq.s32.totalorder %s29, 1
      %p157 = por %p155, %p156
      %p159 = scmp.ne.s32.totalorder %s144, %s158
      %p160 = scmp.eq.s32.totalorder %s29, 0
      %p161 = por %p159, %p160
      %s163 = sadd.s32 %s162, 1
      %p166 = scmp.eq.s32.totalorder %s23, 1
      %p167 = scmp.ne.s32.totalorder %s162, %s164
      %p168 = scmp.eq.s32.totalorder %s23, 0
      %p169 = por %p167, %p168
      %p170 = scmp.ne.s32.totalorder %s162, %s164
      %p171 = scmp.eq.s32.totalorder %s28, 1
      %p172 = por %p170, %p171
      %p173 = scmp.ne.s32.totalorder %s164, %s165
      %p174 = scmp.eq.s32.totalorder %s28, 0
      %p175 = por %p173, %p174
      %p176 = scmp.ne.s32.totalorder %s164, %s165
      %p177 = scmp.eq.s32.totalorder %s29, 1
      %p178 = por %p176, %p177
      %p180 = scmp.ne.s32.totalorder %s165, %s179
      %p181 = scmp.eq.s32.totalorder %s29, 0
      %p182 = por %p180, %p181
      %s184 = sadd.s32 %s183, 1
      %p187 = scmp.eq.s32.totalorder %s23, 1
      %p188 = scmp.ne.s32.totalorder %s183, %s185
      %p189 = scmp.eq.s32.totalorder %s23, 0
      %p190 = por %p188, %p189
      %p191 = scmp.ne.s32.totalorder %s183, %s185
      %p192 = scmp.eq.s32.totalorder %s28, 1
      %p193 = por %p191, %p192
      %p194 = scmp.ne.s32.totalorder %s185, %s186
      %p195 = scmp.eq.s32.totalorder %s28, 0
      %p196 = por %p194, %p195
      %p197 = scmp.ne.s32.totalorder %s185, %s186
      %p198 = scmp.eq.s32.totalorder %s29, 1
      %p199 = por %p197, %p198
      %p201 = scmp.ne.s32.totalorder %s186, %s200
      %p202 = scmp.eq.s32.totalorder %s29, 0
      %p203 = por %p201, %p202
      %s205 = sadd.s32 %s204, 1
      %p208 = scmp.eq.s32.totalorder %s23, 1
      %p209 = scmp.ne.s32.totalorder %s204, %s206
      %p210 = scmp.eq.s32.totalorder %s23, 0
      %p211 = por %p209, %p210
      %p212 = scmp.ne.s32.totalorder %s204, %s206
      %p213 = scmp.eq.s32.totalorder %s28, 1
      %p214 = por %p212, %p213
      %p215 = scmp.ne.s32.totalorder %s206, %s207
      %p216 = scmp.eq.s32.totalorder %s28, 0
      %p217 = por %p215, %p216
      %p218 = scmp.ne.s32.totalorder %s206, %s207
      %p219 = scmp.eq.s32.totalorder %s29, 1
      %p220 = por %p218, %p219
      %p222 = scmp.ne.s32.totalorder %s207, %s221
      %p223 = scmp.eq.s32.totalorder %s29, 0
      %p224 = por %p222, %p223
      %s225 = ssub.s32 %s23, %s30
      %p226 = scmp.eq.s32.totalorder %s225, 0
      %s228 = sadd.s32 %s227, 1
      %s229 = scalar_select %p226, %s227, %s228
      %p232 = pneg %p226
      %p233 = scmp.eq.s32.totalorder %s23, 1
      %p234 = por %p232, %p233
      %p235 = scmp.ne.s32.totalorder %s227, %s230
      %p236 = scmp.eq.s32.totalorder %s23, 0
      %p237 = por %p235, %p236
      %p238 = scmp.ne.s32.totalorder %s227, %s230
      %p239 = scmp.eq.s32.totalorder %s28, 1
      %p240 = por %p238, %p239
      %p241 = scmp.ne.s32.totalorder %s230, %s231
      %p242 = scmp.eq.s32.totalorder %s28, 0
      %p243 = por %p241, %p242
      %p244 = scmp.ne.s32.totalorder %s230, %s231
      %p245 = scmp.eq.s32.totalorder %s29, 1
      %p246 = por %p244, %p245
      %p248 = scmp.ne.s32.totalorder %s231, %s247
      %p249 = scmp.eq.s32.totalorder %s29, 0
      %p250 = por %p248, %p249
      %p251 = scmp.le.s32.totalorder 1, %s23
      %p252 = scmp.lt.s32.totalorder %s23, 3
      %p253 = pnand %p251, %p252
      %p254 = pneg %p253
      // Predicated region
      $region9: #{tpu_custom_call.1} parent=5 // pred_check
        _
      $region10: #{tpu_custom_call.1} parent=5 // pred_check_branch
        %256 = sbr.rel (%p253) target = $region12
      $region11: #{tpu_custom_call.1} parent=5 // pred_region
        %s257 = ssub.s32 %s23, 1
        // Predicated region
        $region13: #{tpu_custom_call.1} parent=11 // pred_check
          %p258 = pneg %p70
        $region14: #{tpu_custom_call.1} parent=11 // pred_check_branch
          %260 = sbr.rel (%p258) target = $region16
        $region15: #{tpu_custom_call.1} parent=11 // pred_region
          %s262 = ssub.s32 2048, 2048
          %263 = vsyncadd [#allocation7], %s262
          %s264 = sshll.u32 [#allocation6], 4
          %s265 = int_to_ptr.vmem [resolvable:$true] %s264
          %270 = dma.hbm_to_vmem [thread:$0]  %s1, 2048, %s265, [#allocation7], 128, 128, 8
        $region16: #{tpu_custom_call.1} parent=11 // pred_fallthru
          _
        // Predicated region
        $region17: #{tpu_custom_call.1} parent=11 // pred_check
          %p271 = pneg %p91
        $region18: #{tpu_custom_call.1} parent=11 // pred_check_branch
          %273 = sbr.rel (%p271) target = $region20
        $region19: #{tpu_custom_call.1} parent=11 // pred_region
          _
        $region20: #{tpu_custom_call.1} parent=11 // pred_fallthru
          _
        // Predicated region
        $region21: #{tpu_custom_call.1} parent=11 // pred_check
          %p274 = pneg %p112
        $region22: #{tpu_custom_call.1} parent=11 // pred_check_branch
          %276 = sbr.rel (%p274) target = $region24
        $region23: #{tpu_custom_call.1} parent=11 // pred_region
          %s278 = ssub.s32 2048, 2048
          %279 = vsyncadd [#allocation7], %s278
          %s280 = sshll.u32 [#allocation8], 4
          %s281 = int_to_ptr.vmem [resolvable:$true] %s280
          %286 = dma.hbm_to_vmem [thread:$0]  %s3, 2048, %s281, [#allocation7], 128, 128, 8
        $region24: #{tpu_custom_call.1} parent=11 // pred_fallthru
          _
        // Predicated region
        $region25: #{tpu_custom_call.1} parent=11 // pred_check
          %p287 = pneg %p133
        $region26: #{tpu_custom_call.1} parent=11 // pred_check_branch
          %289 = sbr.rel (%p287) target = $region28
        $region27: #{tpu_custom_call.1} parent=11 // pred_region
          _
        $region28: #{tpu_custom_call.1} parent=11 // pred_fallthru
          _
        // Predicated region
        $region29: #{tpu_custom_call.1} parent=11 // pred_check
          %p290 = pneg %p154
        $region30: #{tpu_custom_call.1} parent=11 // pred_check_branch
          %292 = sbr.rel (%p290) target = $region32
        $region31: #{tpu_custom_call.1} parent=11 // pred_region
          %s294 = ssub.s32 2048, 2048
          %295 = vsyncadd [#allocation10], %s294
          %s296 = sshll.u32 [#allocation9], 4
          %s297 = int_to_ptr.vmem [resolvable:$true] %s296
          %302 = dma.hbm_to_vmem [thread:$0]  %s5, 2048, %s297, [#allocation10], 128, 128, 8
        $region32: #{tpu_custom_call.1} parent=11 // pred_fallthru
          _
        // Predicated region
        $region33: #{tpu_custom_call.1} parent=11 // pred_check
          %p303 = pneg %p175
        $region34: #{tpu_custom_call.1} parent=11 // pred_check_branch
          %305 = sbr.rel (%p303) target = $region36
        $region35: #{tpu_custom_call.1} parent=11 // pred_region
          _
        $region36: #{tpu_custom_call.1} parent=11 // pred_fallthru
          _
        // Predicated region
        $region37: #{tpu_custom_call.1} parent=11 // pred_check
          %p306 = pneg %p196
        $region38: #{tpu_custom_call.1} parent=11 // pred_check_branch
          %308 = sbr.rel (%p306) target = $region40
        $region39: #{tpu_custom_call.1} parent=11 // pred_region
          %s310 = ssub.s32 2048, 2048
          %311 = vsyncadd [#allocation10], %s310
          %s312 = sshll.u32 [#allocation11], 4
          %s313 = int_to_ptr.vmem [resolvable:$true] %s312
          %318 = dma.hbm_to_vmem [thread:$0]  %s7, 2048, %s313, [#allocation10], 128, 128, 8
        $region40: #{tpu_custom_call.1} parent=11 // pred_fallthru
          _
        // Predicated region
        $region41: #{tpu_custom_call.1} parent=11 // pred_check
          %p319 = pneg %p217
        $region42: #{tpu_custom_call.1} parent=11 // pred_check_branch
          %321 = sbr.rel (%p319) target = $region44
        $region43: #{tpu_custom_call.1} parent=11 // pred_region
          _
        $region44: #{tpu_custom_call.1} parent=11 // pred_fallthru
          _
      $region12: #{tpu_custom_call.1} parent=5 // pred_fallthru
        _
      %p322 = scmp.lt.s32.totalorder %s23, 2
      // Predicated region
      $region45: #{tpu_custom_call.1} parent=5 // pred_check
        %p323 = pneg %p322
      $region46: #{tpu_custom_call.1} parent=5 // pred_check_branch
        %325 = sbr.rel (%p323) target = $region48
      $region47: #{tpu_custom_call.1} parent=5 // pred_region
        // Predicated region
        $region49: #{tpu_custom_call.1} parent=47 // pred_check
          %p326 = pneg %p43
        $region50: #{tpu_custom_call.1} parent=47 // pred_check_branch
          %328 = sbr.rel (%p326) target = $region52
        $region51: #{tpu_custom_call.1} parent=47 // pred_region
          %s329 = sand.u32 %s33, 1
          %s330 = scalar_lea.sflag [#allocation4], %s329
          %s331 = sand.u32 %s33, 1
          %s332 = smul.addr %s331, 8
          %s333 = scalar_lea.vmem [#allocation3], %s332
          %s335 = ssub.s32 128, 128
          %336 = vsyncadd %s330, %s335
          %s337 = smul.addr %s23, 128
          %s338 = scalar_lea.hbm %s0, %s337
          %s340 = sshll.u32 %s333, 4
          %s341 = int_to_ptr.vmem [resolvable:$true] %s340
          %343 = dma.hbm_to_vmem [thread:$0]  %s338, 128, %s341, %s330
        $region52: #{tpu_custom_call.1} parent=47 // pred_fallthru
          _
      $region48: #{tpu_custom_call.1} parent=5 // pred_fallthru
        _
      %p344 = scmp.le.s32.totalorder 1, %s23
      %p345 = scmp.lt.s32.totalorder %s23, 3
      %p346 = pnand %p344, %p345
      %p347 = pneg %p346
      // Predicated region
      $region53: #{tpu_custom_call.1} parent=5 // pred_check
        _
      $region54: #{tpu_custom_call.1} parent=5 // pred_check_branch
        %349 = sbr.rel (%p346) target = $region56
      $region55: #{tpu_custom_call.1} parent=5 // pred_region
        %s350 = ssub.s32 %s23, 1
        %s351 = sand.u32 %s36, 1
        %s352 = scalar_lea.sflag [#allocation4], %s351
        %s353 = sand.u32 %s36, 1
        %s354 = smul.addr %s353, 8
        %s355 = scalar_lea.vmem [#allocation3], %s354
        // Predicated region
        $region57: #{tpu_custom_call.1} parent=55 // pred_check
          %p356 = pneg %p49
        $region58: #{tpu_custom_call.1} parent=55 // pred_check_branch
          %358 = sbr.rel (%p356) target = $region60
        $region59: #{tpu_custom_call.1} parent=55 // pred_region
          %359 = dma.done %s352, 128
        $region60: #{tpu_custom_call.1} parent=55 // pred_fallthru
          _
        // Predicated region
        $region61: #{tpu_custom_call.1} parent=55 // pred_check
          %p360 = pneg %p70
        $region62: #{tpu_custom_call.1} parent=55 // pred_check_branch
          %362 = sbr.rel (%p360) target = $region64
        $region63: #{tpu_custom_call.1} parent=55 // pred_region
          %363 = dma.done [#allocation7], 2048
        $region64: #{tpu_custom_call.1} parent=55 // pred_fallthru
          _
        // Predicated region
        $region65: #{tpu_custom_call.1} parent=55 // pred_check
          %p364 = pneg %p112
        $region66: #{tpu_custom_call.1} parent=55 // pred_check_branch
          %366 = sbr.rel (%p364) target = $region68
        $region67: #{tpu_custom_call.1} parent=55 // pred_region
          %367 = dma.done [#allocation7], 2048
        $region68: #{tpu_custom_call.1} parent=55 // pred_fallthru
          _
        // Predicated region
        $region69: #{tpu_custom_call.1} parent=55 // pred_check
          %p368 = pneg %p154
        $region70: #{tpu_custom_call.1} parent=55 // pred_check_branch
          %370 = sbr.rel (%p368) target = $region72
        $region71: #{tpu_custom_call.1} parent=55 // pred_region
          %371 = dma.done [#allocation10], 2048
        $region72: #{tpu_custom_call.1} parent=55 // pred_fallthru
          _
        // Predicated region
        $region73: #{tpu_custom_call.1} parent=55 // pred_check
          %p372 = pneg %p196
        $region74: #{tpu_custom_call.1} parent=55 // pred_check_branch
          %374 = sbr.rel (%p372) target = $region76
        $region75: #{tpu_custom_call.1} parent=55 // pred_region
          %375 = dma.done [#allocation10], 2048
        $region76: #{tpu_custom_call.1} parent=55 // pred_fallthru
          _
        %s376 = sand.u32 %s36, 1
        %s377 = scalar_lea.sflag [#allocation4], %s376
        %s378 = sand.u32 %s36, 1
        %s379 = smul.addr %s378, 8
        %s380 = scalar_lea.vmem [#allocation3], %s379
        %p381 = pneg %p49
        %p382 = pneg %p46
        %p383 = pneg %p70
        %p384 = pneg %p67
        %p385 = pneg %p91
        %p386 = pneg %p88
        %p387 = pneg %p112
        %p388 = pneg %p109
        %p389 = pneg %p133
        %p390 = pneg %p130
        %p391 = pneg %p154
        %p392 = pneg %p151
        %p393 = pneg %p175
        %p394 = pneg %p172
        %p395 = pneg %p196
        %p396 = pneg %p193
        %p397 = pneg %p217
        %p398 = pneg %p214
        %p399 = pneg %p243
        %p400 = pneg %p240
        %s401 = sand.u32 %s230, 1
        %s402 = scalar_lea.sflag [#allocation5], %s401
        %s403 = sand.u32 %s230, 1
        %s404 = smul.addr %s403, 8
        %s405 = scalar_lea.vmem [#allocation12], %s404
        %v406 = vld [vmem:[%s355] sm:$0xff]
        %v407 = vld [vmem:[#allocation6] sm:$0xff]
        %v408 = vld [vmem:[#allocation6 + $0x8] sm:$0xff]
        %v409 = vld [vmem:[#allocation6 + $0x10] sm:$0xff]
        %v410 = vld [vmem:[#allocation6 + $0x18] sm:$0xff]
        %v411 = vld [vmem:[#allocation6 + $0x20] sm:$0xff]
        %v412 = vld [vmem:[#allocation6 + $0x28] sm:$0xff]
        %v413 = vld [vmem:[#allocation6 + $0x30] sm:$0xff]
        %v414 = vld [vmem:[#allocation6 + $0x38] sm:$0xff]
        %v415 = vld [vmem:[#allocation6 + $0x40] sm:$0xff]
        %v416 = vld [vmem:[#allocation6 + $0x48] sm:$0xff]
        %v417 = vld [vmem:[#allocation6 + $0x50] sm:$0xff]
        %v418 = vld [vmem:[#allocation6 + $0x58] sm:$0xff]
        %v419 = vld [vmem:[#allocation6 + $0x60] sm:$0xff]
        %v420 = vld [vmem:[#allocation6 + $0x68] sm:$0xff]
        %v421 = vld [vmem:[#allocation6 + $0x70] sm:$0xff]
        %v422 = vld [vmem:[#allocation6 + $0x78] sm:$0xff]
        %v423 = vld [vmem:[%s2] sm:$0x1]
        %v425 = vlaneseq
        %v426 = vshrl.u32 %v425, 7
        %v427 = vsub.s32 0, %v426
        %v428 = vrot.slane %v423, %v427
        %430 = vmatprep.subr.mxu0 0.0
        %431 = vmatpush1.msra.mxu0 %v422
        %432 = vmatprep.subr.mxu0 0.0
        %433 = vmatpush1.msra.mxu0 %v421
        %434 = vmatprep.subr.mxu0 0.0
        %435 = vmatpush1.msra.mxu0 %v420
        %436 = vmatprep.subr.mxu0 0.0
        %437 = vmatpush1.msra.mxu0 %v419
        %438 = vmatprep.subr.mxu0 0.0
        %439 = vmatpush1.msra.mxu0 %v418
        %440 = vmatprep.subr.mxu0 0.0
        %441 = vmatpush1.msra.mxu0 %v417
        %442 = vmatprep.subr.mxu0 0.0
        %443 = vmatpush1.msra.mxu0 %v416
        %444 = vmatprep.subr.mxu0 0.0
        %445 = vmatpush1.msra.mxu0 %v415
        %446 = vmatprep.subr.mxu0 0.0
        %447 = vmatpush1.msra.mxu0 %v414
        %448 = vmatprep.subr.mxu0 0.0
        %449 = vmatpush1.msra.mxu0 %v413
        %450 = vmatprep.subr.mxu0 0.0
        %451 = vmatpush1.msra.mxu0 %v412
        %452 = vmatprep.subr.mxu0 0.0
        %453 = vmatpush1.msra.mxu0 %v411
        %454 = vmatprep.subr.mxu0 0.0
        %455 = vmatpush1.msra.mxu0 %v410
        %456 = vmatprep.subr.mxu0 0.0
        %457 = vmatpush1.msra.mxu0 %v409
        %458 = vmatprep.subr.mxu0 0.0
        %459 = vmatpush1.msra.mxu0 %v408
        %460 = vmatprep.subr.mxu0 0.0
        %461 = vmatpush1.msra.mxu0 %v407
        %462 = vmatprep.subr.mxu0 0.0
        %463 = vmatpush2.msra.mxu0 0.0
        %464 = vmatprep.subr.mxu0 0.0
        %465 = vmatpush2.msra.mxu0 0.0
        %466 = vmatprep.subr.mxu0 0.0
        %467 = vmatpush2.msra.mxu0 0.0
        %468 = vmatprep.subr.mxu0 0.0
        %469 = vmatpush2.msra.mxu0 0.0
        %470 = vmatprep.subr.mxu0 0.0
        %471 = vmatpush2.msra.mxu0 0.0
        %472 = vmatprep.subr.mxu0 0.0
        %473 = vmatpush2.msra.mxu0 0.0
        %474 = vmatprep.subr.mxu0 0.0
        %475 = vmatpush2.msra.mxu0 0.0
        %476 = vmatprep.subr.mxu0 0.0
        %477 = vmatpush2.msra.mxu0 0.0
        %478 = vmatprep.subr.mxu0 0.0
        %479 = vmatpush2.msra.mxu0 0.0
        %480 = vmatprep.subr.mxu0 0.0
        %481 = vmatpush2.msra.mxu0 0.0
        %482 = vmatprep.subr.mxu0 0.0
        %483 = vmatpush2.msra.mxu0 0.0
        %484 = vmatprep.subr.mxu0 0.0
        %485 = vmatpush2.msra.mxu0 0.0
        %486 = vmatprep.subr.mxu0 0.0
        %487 = vmatpush2.msra.mxu0 0.0
        %488 = vmatprep.subr.mxu0 0.0
        %489 = vmatpush2.msra.mxu0 0.0
        %490 = vmatprep.subr.mxu0 0.0
        %491 = vmatpush2.msra.mxu0 0.0
        %492 = vmatprep.subr.mxu0 0.0
        %493 = vmatpush2.msra.mxu0 0.0
        %494 = vmatprep.mubr.f32.mxu0 0.0
        %495 = vmatmul.mubr.f32.gmra.mxu0 %v406
        %v496 = vpop.f32.mrf.mxu0
        %v497 = vadd.f32 %v428, %v496
        %v498 = vpop.f32.mrf.mxu0
        %499 = vdwg.mxu0
        %v500 = vld [vmem:[#allocation8] sm:$0xff]
        %v501 = vld [vmem:[#allocation8 + $0x8] sm:$0xff]
        %v502 = vld [vmem:[#allocation8 + $0x10] sm:$0xff]
        %v503 = vld [vmem:[#allocation8 + $0x18] sm:$0xff]
        %v504 = vld [vmem:[#allocation8 + $0x20] sm:$0xff]
        %v505 = vld [vmem:[#allocation8 + $0x28] sm:$0xff]
        %v506 = vld [vmem:[#allocation8 + $0x30] sm:$0xff]
        %v507 = vld [vmem:[#allocation8 + $0x38] sm:$0xff]
        %v508 = vld [vmem:[#allocation8 + $0x40] sm:$0xff]
        %v509 = vld [vmem:[#allocation8 + $0x48] sm:$0xff]
        %v510 = vld [vmem:[#allocation8 + $0x50] sm:$0xff]
        %v511 = vld [vmem:[#allocation8 + $0x58] sm:$0xff]
        %v512 = vld [vmem:[#allocation8 + $0x60] sm:$0xff]
        %v513 = vld [vmem:[#allocation8 + $0x68] sm:$0xff]
        %v514 = vld [vmem:[#allocation8 + $0x70] sm:$0xff]
        %v515 = vld [vmem:[#allocation8 + $0x78] sm:$0xff]
        %v516 = vld [vmem:[%s4] sm:$0x1]
        %v518 = vlaneseq
        %v519 = vshrl.u32 %v518, 7
        %v520 = vsub.s32 0, %v519
        %v521 = vrot.slane %v516, %v520
        %523 = vmatprep.subr.mxu0 0.0
        %524 = vmatpush1.msra.mxu0 %v515
        %525 = vmatprep.subr.mxu0 0.0
        %526 = vmatpush1.msra.mxu0 %v514
        %527 = vmatprep.subr.mxu0 0.0
        %528 = vmatpush1.msra.mxu0 %v513
        %529 = vmatprep.subr.mxu0 0.0
        %530 = vmatpush1.msra.mxu0 %v512
        %531 = vmatprep.subr.mxu0 0.0
        %532 = vmatpush1.msra.mxu0 %v511
        %533 = vmatprep.subr.mxu0 0.0
        %534 = vmatpush1.msra.mxu0 %v510
        %535 = vmatprep.subr.mxu0 0.0
        %536 = vmatpush1.msra.mxu0 %v509
        %537 = vmatprep.subr.mxu0 0.0
        %538 = vmatpush1.msra.mxu0 %v508
        %539 = vmatprep.subr.mxu0 0.0
        %540 = vmatpush1.msra.mxu0 %v507
        %541 = vmatprep.subr.mxu0 0.0
        %542 = vmatpush1.msra.mxu0 %v506
        %543 = vmatprep.subr.mxu0 0.0
        %544 = vmatpush1.msra.mxu0 %v505
        %545 = vmatprep.subr.mxu0 0.0
        %546 = vmatpush1.msra.mxu0 %v504
        %547 = vmatprep.subr.mxu0 0.0
        %548 = vmatpush1.msra.mxu0 %v503
        %549 = vmatprep.subr.mxu0 0.0
        %550 = vmatpush1.msra.mxu0 %v502
        %551 = vmatprep.subr.mxu0 0.0
        %552 = vmatpush1.msra.mxu0 %v501
        %553 = vmatprep.subr.mxu0 0.0
        %554 = vmatpush1.msra.mxu0 %v500
        %555 = vmatprep.subr.mxu0 0.0
        %556 = vmatpush2.msra.mxu0 0.0
        %557 = vmatprep.subr.mxu0 0.0
        %558 = vmatpush2.msra.mxu0 0.0
        %559 = vmatprep.subr.mxu0 0.0
        %560 = vmatpush2.msra.mxu0 0.0
        %561 = vmatprep.subr.mxu0 0.0
        %562 = vmatpush2.msra.mxu0 0.0
        %563 = vmatprep.subr.mxu0 0.0
        %564 = vmatpush2.msra.mxu0 0.0
        %565 = vmatprep.subr.mxu0 0.0
        %566 = vmatpush2.msra.mxu0 0.0
        %567 = vmatprep.subr.mxu0 0.0
        %568 = vmatpush2.msra.mxu0 0.0
        %569 = vmatprep.subr.mxu0 0.0
        %570 = vmatpush2.msra.mxu0 0.0
        %571 = vmatprep.subr.mxu0 0.0
        %572 = vmatpush2.msra.mxu0 0.0
        %573 = vmatprep.subr.mxu0 0.0
        %574 = vmatpush2.msra.mxu0 0.0
        %575 = vmatprep.subr.mxu0 0.0
        %576 = vmatpush2.msra.mxu0 0.0
        %577 = vmatprep.subr.mxu0 0.0
        %578 = vmatpush2.msra.mxu0 0.0
        %579 = vmatprep.subr.mxu0 0.0
        %580 = vmatpush2.msra.mxu0 0.0
        %581 = vmatprep.subr.mxu0 0.0
        %582 = vmatpush2.msra.mxu0 0.0
        %583 = vmatprep.subr.mxu0 0.0
        %584 = vmatpush2.msra.mxu0 0.0
        %585 = vmatprep.subr.mxu0 0.0
        %586 = vmatpush2.msra.mxu0 0.0
        %587 = vmatprep.mubr.f32.mxu0 0.0
        %588 = vmatmul.mubr.f32.gmra.mxu0 %v406
        %v589 = vpop.f32.mrf.mxu0
        %v590 = vadd.f32 %v521, %v589
        %v591 = vpop.f32.mrf.mxu0
        %592 = vdwg.mxu0
        %v593 = vld [vmem:[#allocation9] sm:$0xff]
        %v594 = vld [vmem:[#allocation9 + $0x8] sm:$0xff]
        %v595 = vld [vmem:[#allocation9 + $0x10] sm:$0xff]
        %v596 = vld [vmem:[#allocation9 + $0x18] sm:$0xff]
        %v597 = vld [vmem:[#allocation9 + $0x20] sm:$0xff]
        %v598 = vld [vmem:[#allocation9 + $0x28] sm:$0xff]
        %v599 = vld [vmem:[#allocation9 + $0x30] sm:$0xff]
        %v600 = vld [vmem:[#allocation9 + $0x38] sm:$0xff]
        %v601 = vld [vmem:[#allocation9 + $0x40] sm:$0xff]
        %v602 = vld [vmem:[#allocation9 + $0x48] sm:$0xff]
        %v603 = vld [vmem:[#allocation9 + $0x50] sm:$0xff]
        %v604 = vld [vmem:[#allocation9 + $0x58] sm:$0xff]
        %v605 = vld [vmem:[#allocation9 + $0x60] sm:$0xff]
        %v606 = vld [vmem:[#allocation9 + $0x68] sm:$0xff]
        %v607 = vld [vmem:[#allocation9 + $0x70] sm:$0xff]
        %v608 = vld [vmem:[#allocation9 + $0x78] sm:$0xff]
        %v609 = vld [vmem:[%s6] sm:$0x1]
        %v611 = vlaneseq
        %v612 = vshrl.u32 %v611, 7
        %v613 = vsub.s32 0, %v612
        %v614 = vrot.slane %v609, %v613
        %616 = vmatprep.subr.mxu0 0.0
        %617 = vmatpush1.msra.mxu0 %v608
        %618 = vmatprep.subr.mxu0 0.0
        %619 = vmatpush1.msra.mxu0 %v607
        %620 = vmatprep.subr.mxu0 0.0
        %621 = vmatpush1.msra.mxu0 %v606
        %622 = vmatprep.subr.mxu0 0.0
        %623 = vmatpush1.msra.mxu0 %v605
        %624 = vmatprep.subr.mxu0 0.0
        %625 = vmatpush1.msra.mxu0 %v604
        %626 = vmatprep.subr.mxu0 0.0
        %627 = vmatpush1.msra.mxu0 %v603
        %628 = vmatprep.subr.mxu0 0.0
        %629 = vmatpush1.msra.mxu0 %v602
        %630 = vmatprep.subr.mxu0 0.0
        %631 = vmatpush1.msra.mxu0 %v601
        %632 = vmatprep.subr.mxu0 0.0
        %633 = vmatpush1.msra.mxu0 %v600
        %634 = vmatprep.subr.mxu0 0.0
        %635 = vmatpush1.msra.mxu0 %v599
        %636 = vmatprep.subr.mxu0 0.0
        %637 = vmatpush1.msra.mxu0 %v598
        %638 = vmatprep.subr.mxu0 0.0
        %639 = vmatpush1.msra.mxu0 %v597
        %640 = vmatprep.subr.mxu0 0.0
        %641 = vmatpush1.msra.mxu0 %v596
        %642 = vmatprep.subr.mxu0 0.0
        %643 = vmatpush1.msra.mxu0 %v595
        %644 = vmatprep.subr.mxu0 0.0
        %645 = vmatpush1.msra.mxu0 %v594
        %646 = vmatprep.subr.mxu0 0.0
        %647 = vmatpush1.msra.mxu0 %v593
        %648 = vmatprep.subr.mxu0 0.0
        %649 = vmatpush2.msra.mxu0 0.0
        %650 = vmatprep.subr.mxu0 0.0
        %651 = vmatpush2.msra.mxu0 0.0
        %652 = vmatprep.subr.mxu0 0.0
        %653 = vmatpush2.msra.mxu0 0.0
        %654 = vmatprep.subr.mxu0 0.0
        %655 = vmatpush2.msra.mxu0 0.0
        %656 = vmatprep.subr.mxu0 0.0
        %657 = vmatpush2.msra.mxu0 0.0
        %658 = vmatprep.subr.mxu0 0.0
        %659 = vmatpush2.msra.mxu0 0.0
        %660 = vmatprep.subr.mxu0 0.0
        %661 = vmatpush2.msra.mxu0 0.0
        %662 = vmatprep.subr.mxu0 0.0
        %663 = vmatpush2.msra.mxu0 0.0
        %664 = vmatprep.subr.mxu0 0.0
        %665 = vmatpush2.msra.mxu0 0.0
        %666 = vmatprep.subr.mxu0 0.0
        %667 = vmatpush2.msra.mxu0 0.0
        %668 = vmatprep.subr.mxu0 0.0
        %669 = vmatpush2.msra.mxu0 0.0
        %670 = vmatprep.subr.mxu0 0.0
        %671 = vmatpush2.msra.mxu0 0.0
        %672 = vmatprep.subr.mxu0 0.0
        %673 = vmatpush2.msra.mxu0 0.0
        %674 = vmatprep.subr.mxu0 0.0
        %675 = vmatpush2.msra.mxu0 0.0
        %676 = vmatprep.subr.mxu0 0.0
        %677 = vmatpush2.msra.mxu0 0.0
        %678 = vmatprep.subr.mxu0 0.0
        %679 = vmatpush2.msra.mxu0 0.0
        %680 = vmatprep.mubr.f32.mxu0 0.0
        %681 = vmatmul.mubr.f32.gmra.mxu0 %v406
        %v682 = vpop.f32.mrf.mxu0
        %v683 = vadd.f32 %v614, %v682
        %v684 = vpop.f32.mrf.mxu0
        %685 = vdwg.mxu0
        %vm686 = vcmask 130048
        %v688 = vsel %vm686, %v497, 0
        %v691 = vsel %vm686, %v590, 0
        %693 = vmatprep.subr.mxu0 0.0
        %694 = vmatpush1.xpose.msra.mxu0 0.0
        %695 = vmatprep.subr.mxu0 0.0
        %696 = vmatpush1.xpose.msra.mxu0 0.0
        %697 = vmatprep.subr.mxu0 0.0
        %698 = vmatpush1.xpose.msra.mxu0 0.0
        %699 = vmatprep.subr.mxu0 0.0
        %700 = vmatpush1.xpose.msra.mxu0 0.0
        %701 = vmatprep.subr.mxu0 0.0
        %702 = vmatpush1.xpose.msra.mxu0 0.0
        %703 = vmatprep.subr.mxu0 0.0
        %704 = vmatpush1.xpose.msra.mxu0 0.0
        %705 = vmatprep.subr.mxu0 0.0
        %706 = vmatpush1.xpose.msra.mxu0 0.0
        %707 = vmatprep.subr.mxu0 0.0
        %708 = vmatpush1.xpose.msra.mxu0 0.0
        %709 = vmatprep.subr.mxu0 0.0
        %710 = vmatpush1.xpose.msra.mxu0 0.0
        %711 = vmatprep.subr.mxu0 0.0
        %712 = vmatpush1.xpose.msra.mxu0 0.0
        %713 = vmatprep.subr.mxu0 0.0
        %714 = vmatpush1.xpose.msra.mxu0 0.0
        %715 = vmatprep.subr.mxu0 0.0
        %716 = vmatpush1.xpose.msra.mxu0 0.0
        %717 = vmatprep.subr.mxu0 0.0
        %718 = vmatpush1.xpose.msra.mxu0 0.0
        %719 = vmatprep.subr.mxu0 0.0
        %720 = vmatpush1.xpose.msra.mxu0 0.0
        %721 = vmatprep.subr.mxu0 0.0
        %722 = vmatpush1.xpose.msra.mxu0 0.0
        %723 = vmatprep.subr.mxu0 0.0
        %724 = vmatpush1.xpose.msra.mxu0 %v691
        %725 = vmatprep.subr.mxu0 0.0
        %726 = vmatpush2.xpose.msra.mxu0 0.0
        %727 = vmatprep.subr.mxu0 0.0
        %728 = vmatpush2.xpose.msra.mxu0 0.0
        %729 = vmatprep.subr.mxu0 0.0
        %730 = vmatpush2.xpose.msra.mxu0 0.0
        %731 = vmatprep.subr.mxu0 0.0
        %732 = vmatpush2.xpose.msra.mxu0 0.0
        %733 = vmatprep.subr.mxu0 0.0
        %734 = vmatpush2.xpose.msra.mxu0 0.0
        %735 = vmatprep.subr.mxu0 0.0
        %736 = vmatpush2.xpose.msra.mxu0 0.0
        %737 = vmatprep.subr.mxu0 0.0
        %738 = vmatpush2.xpose.msra.mxu0 0.0
        %739 = vmatprep.subr.mxu0 0.0
        %740 = vmatpush2.xpose.msra.mxu0 0.0
        %741 = vmatprep.subr.mxu0 0.0
        %742 = vmatpush2.xpose.msra.mxu0 0.0
        %743 = vmatprep.subr.mxu0 0.0
        %744 = vmatpush2.xpose.msra.mxu0 0.0
        %745 = vmatprep.subr.mxu0 0.0
        %746 = vmatpush2.xpose.msra.mxu0 0.0
        %747 = vmatprep.subr.mxu0 0.0
        %748 = vmatpush2.xpose.msra.mxu0 0.0
        %749 = vmatprep.subr.mxu0 0.0
        %750 = vmatpush2.xpose.msra.mxu0 0.0
        %751 = vmatprep.subr.mxu0 0.0
        %752 = vmatpush2.xpose.msra.mxu0 0.0
        %753 = vmatprep.subr.mxu0 0.0
        %754 = vmatpush2.xpose.msra.mxu0 0.0
        %755 = vmatprep.subr.mxu0 0.0
        %756 = vmatpush2.xpose.msra.mxu0 0.0
        %757 = vmatprep.mubr.f32.mxu0 0.0
        %758 = vmatmul.mubr.f32.gmra.mxu0 %v688
        %v759 = vpop.f32.mrf.mxu0
        %v760 = vadd.f32 0.0, %v759
        %v761 = vpop.f32.mrf.mxu0
        %762 = vdwg.mxu0
        %vm763 = vcmask 64512
        %v764 = vsel %vm763, %v760, -inf
        %765 = vmax.xlane.f32.xlu0 %v764
        %v766 = vpop.xlane.xlu0 %765
        %v767 = vsub.f32 %v760, %v766
        %v768 = vmul.f32 %v767, 1.442695
        %v769 = vpow.pop %v768
        %v770 = vsel %vm763, %v769, 0.0
        %771 = vadd.xlane.f32.xlu0 %v770
        %v772 = vpop.xlane.xlu0 %771
        %v773 = vrcp.pop %v772
        %v774 = vmul.f32 %v769, %v773
        %v776 = vsel %vm763, %v774, 0
        %778 = vmatprep.subr.mxu0 0.0
        %779 = vmatpush1.msra.mxu0 0.0
        %780 = vmatprep.subr.mxu0 0.0
        %781 = vmatpush1.msra.mxu0 0.0
        %782 = vmatprep.subr.mxu0 0.0
        %783 = vmatpush1.msra.mxu0 0.0
        %784 = vmatprep.subr.mxu0 0.0
        %785 = vmatpush1.msra.mxu0 0.0
        %786 = vmatprep.subr.mxu0 0.0
        %787 = vmatpush1.msra.mxu0 0.0
        %788 = vmatprep.subr.mxu0 0.0
        %789 = vmatpush1.msra.mxu0 0.0
        %790 = vmatprep.subr.mxu0 0.0
        %791 = vmatpush1.msra.mxu0 0.0
        %792 = vmatprep.subr.mxu0 0.0
        %793 = vmatpush1.msra.mxu0 0.0
        %794 = vmatprep.subr.mxu0 0.0
        %795 = vmatpush1.msra.mxu0 0.0
        %796 = vmatprep.subr.mxu0 0.0
        %797 = vmatpush1.msra.mxu0 0.0
        %798 = vmatprep.subr.mxu0 0.0
        %799 = vmatpush1.msra.mxu0 0.0
        %800 = vmatprep.subr.mxu0 0.0
        %801 = vmatpush1.msra.mxu0 0.0
        %802 = vmatprep.subr.mxu0 0.0
        %803 = vmatpush1.msra.mxu0 0.0
        %804 = vmatprep.subr.mxu0 0.0
        %805 = vmatpush1.msra.mxu0 0.0
        %806 = vmatprep.subr.mxu0 0.0
        %807 = vmatpush1.msra.mxu0 0.0
        %808 = vmatprep.subr.mxu0 0.0
        %809 = vmatpush1.msra.mxu0 %v683
        %810 = vmatprep.subr.mxu0 0.0
        %811 = vmatpush2.msra.mxu0 0.0
        %812 = vmatprep.subr.mxu0 0.0
        %813 = vmatpush2.msra.mxu0 0.0
        %814 = vmatprep.subr.mxu0 0.0
        %815 = vmatpush2.msra.mxu0 0.0
        %816 = vmatprep.subr.mxu0 0.0
        %817 = vmatpush2.msra.mxu0 0.0
        %818 = vmatprep.subr.mxu0 0.0
        %819 = vmatpush2.msra.mxu0 0.0
        %820 = vmatprep.subr.mxu0 0.0
        %821 = vmatpush2.msra.mxu0 0.0
        %822 = vmatprep.subr.mxu0 0.0
        %823 = vmatpush2.msra.mxu0 0.0
        %824 = vmatprep.subr.mxu0 0.0
        %825 = vmatpush2.msra.mxu0 0.0
        %826 = vmatprep.subr.mxu0 0.0
        %827 = vmatpush2.msra.mxu0 0.0
        %828 = vmatprep.subr.mxu0 0.0
        %829 = vmatpush2.msra.mxu0 0.0
        %830 = vmatprep.subr.mxu0 0.0
        %831 = vmatpush2.msra.mxu0 0.0
        %832 = vmatprep.subr.mxu0 0.0
        %833 = vmatpush2.msra.mxu0 0.0
        %834 = vmatprep.subr.mxu0 0.0
        %835 = vmatpush2.msra.mxu0 0.0
        %836 = vmatprep.subr.mxu0 0.0
        %837 = vmatpush2.msra.mxu0 0.0
        %838 = vmatprep.subr.mxu0 0.0
        %839 = vmatpush2.msra.mxu0 0.0
        %840 = vmatprep.subr.mxu0 0.0
        %841 = vmatpush2.msra.mxu0 0.0
        %842 = vmatprep.mubr.f32.mxu0 0.0
        %843 = vmatmul.mubr.f32.gmra.mxu0 %v776
        %v844 = vpop.f32.mrf.mxu0
        %v845 = vadd.f32 0.0, %v844
        %v846 = vpop.f32.mrf.mxu0
        %847 = vdwg.mxu0
        %848 = vst.msk [vmem:[#allocation2] sm:$0xff] %vm686, %v845
        %849 = vrot.lane.b32.xlu0 %v497, 112
        %v850 = vpop.permute.xlu0 %849
        %851 = vrot.lane.b32.xlu0 %v590, 112
        %v852 = vpop.permute.xlu0 %851
        %v853 = vsel %vm686, %v850, 0
        %v855 = vsel %vm686, %v852, 0
        %857 = vmatprep.subr.mxu0 0.0
        %858 = vmatpush1.xpose.msra.mxu0 0.0
        %859 = vmatprep.subr.mxu0 0.0
        %860 = vmatpush1.xpose.msra.mxu0 0.0
        %861 = vmatprep.subr.mxu0 0.0
        %862 = vmatpush1.xpose.msra.mxu0 0.0
        %863 = vmatprep.subr.mxu0 0.0
        %864 = vmatpush1.xpose.msra.mxu0 0.0
        %865 = vmatprep.subr.mxu0 0.0
        %866 = vmatpush1.xpose.msra.mxu0 0.0
        %867 = vmatprep.subr.mxu0 0.0
        %868 = vmatpush1.xpose.msra.mxu0 0.0
        %869 = vmatprep.subr.mxu0 0.0
        %870 = vmatpush1.xpose.msra.mxu0 0.0
        %871 = vmatprep.subr.mxu0 0.0
        %872 = vmatpush1.xpose.msra.mxu0 0.0
        %873 = vmatprep.subr.mxu0 0.0
        %874 = vmatpush1.xpose.msra.mxu0 0.0
        %875 = vmatprep.subr.mxu0 0.0
        %876 = vmatpush1.xpose.msra.mxu0 0.0
        %877 = vmatprep.subr.mxu0 0.0
        %878 = vmatpush1.xpose.msra.mxu0 0.0
        %879 = vmatprep.subr.mxu0 0.0
        %880 = vmatpush1.xpose.msra.mxu0 0.0
        %881 = vmatprep.subr.mxu0 0.0
        %882 = vmatpush1.xpose.msra.mxu0 0.0
        %883 = vmatprep.subr.mxu0 0.0
        %884 = vmatpush1.xpose.msra.mxu0 0.0
        %885 = vmatprep.subr.mxu0 0.0
        %886 = vmatpush1.xpose.msra.mxu0 0.0
        %887 = vmatprep.subr.mxu0 0.0
        %888 = vmatpush1.xpose.msra.mxu0 %v855
        %889 = vmatprep.subr.mxu0 0.0
        %890 = vmatpush2.xpose.msra.mxu0 0.0
        %891 = vmatprep.subr.mxu0 0.0
        %892 = vmatpush2.xpose.msra.mxu0 0.0
        %893 = vmatprep.subr.mxu0 0.0
        %894 = vmatpush2.xpose.msra.mxu0 0.0
        %895 = vmatprep.subr.mxu0 0.0
        %896 = vmatpush2.xpose.msra.mxu0 0.0
        %897 = vmatprep.subr.mxu0 0.0
        %898 = vmatpush2.xpose.msra.mxu0 0.0
        %899 = vmatprep.subr.mxu0 0.0
        %900 = vmatpush2.xpose.msra.mxu0 0.0
        %901 = vmatprep.subr.mxu0 0.0
        %902 = vmatpush2.xpose.msra.mxu0 0.0
        %903 = vmatprep.subr.mxu0 0.0
        %904 = vmatpush2.xpose.msra.mxu0 0.0
        %905 = vmatprep.subr.mxu0 0.0
        %906 = vmatpush2.xpose.msra.mxu0 0.0
        %907 = vmatprep.subr.mxu0 0.0
        %908 = vmatpush2.xpose.msra.mxu0 0.0
        %909 = vmatprep.subr.mxu0 0.0
        %910 = vmatpush2.xpose.msra.mxu0 0.0
        %911 = vmatprep.subr.mxu0 0.0
        %912 = vmatpush2.xpose.msra.mxu0 0.0
        %913 = vmatprep.subr.mxu0 0.0
        %914 = vmatpush2.xpose.msra.mxu0 0.0
        %915 = vmatprep.subr.mxu0 0.0
        %916 = vmatpush2.xpose.msra.mxu0 0.0
        %917 = vmatprep.subr.mxu0 0.0
        %918 = vmatpush2.xpose.msra.mxu0 0.0
        %919 = vmatprep.subr.mxu0 0.0
        %920 = vmatpush2.xpose.msra.mxu0 0.0
        %921 = vmatprep.mubr.f32.mxu0 0.0
        %922 = vmatmul.mubr.f32.gmra.mxu0 %v853
        %v923 = vpop.f32.mrf.mxu0
        %v924 = vadd.f32 0.0, %v923
        %v925 = vpop.f32.mrf.mxu0
        %926 = vdwg.mxu0
        %v927 = vsel %vm763, %v924, -inf
        %928 = vmax.xlane.f32.xlu0 %v927
        %v929 = vpop.xlane.xlu0 %928
        %v930 = vsub.f32 %v924, %v929
        %v931 = vmul.f32 %v930, 1.442695
        %v932 = vpow.pop %v931
        %v933 = vsel %vm763, %v932, 0.0
        %934 = vadd.xlane.f32.xlu0 %v933
        %v935 = vpop.xlane.xlu0 %934
        %v936 = vrcp.pop %v935
        %v937 = vmul.f32 %v932, %v936
        %939 = vrot.lane.b32.xlu0 %v683, 112
        %v940 = vpop.permute.xlu0 %939
        %v943 = vsel %vm763, %v937, 0
        %945 = vmatprep.subr.mxu0 0.0
        %946 = vmatpush1.msra.mxu0 0.0
        %947 = vmatprep.subr.mxu0 0.0
        %948 = vmatpush1.msra.mxu0 0.0
        %949 = vmatprep.subr.mxu0 0.0
        %950 = vmatpush1.msra.mxu0 0.0
        %951 = vmatprep.subr.mxu0 0.0
        %952 = vmatpush1.msra.mxu0 0.0
        %953 = vmatprep.subr.mxu0 0.0
        %954 = vmatpush1.msra.mxu0 0.0
        %955 = vmatprep.subr.mxu0 0.0
        %956 = vmatpush1.msra.mxu0 0.0
        %957 = vmatprep.subr.mxu0 0.0
        %958 = vmatpush1.msra.mxu0 0.0
        %959 = vmatprep.subr.mxu0 0.0
        %960 = vmatpush1.msra.mxu0 0.0
        %961 = vmatprep.subr.mxu0 0.0
        %962 = vmatpush1.msra.mxu0 0.0
        %963 = vmatprep.subr.mxu0 0.0
        %964 = vmatpush1.msra.mxu0 0.0
        %965 = vmatprep.subr.mxu0 0.0
        %966 = vmatpush1.msra.mxu0 0.0
        %967 = vmatprep.subr.mxu0 0.0
        %968 = vmatpush1.msra.mxu0 0.0
        %969 = vmatprep.subr.mxu0 0.0
        %970 = vmatpush1.msra.mxu0 0.0
        %971 = vmatprep.subr.mxu0 0.0
        %972 = vmatpush1.msra.mxu0 0.0
        %973 = vmatprep.subr.mxu0 0.0
        %974 = vmatpush1.msra.mxu0 0.0
        %975 = vmatprep.subr.mxu0 0.0
        %976 = vmatpush1.msra.mxu0 %v940
        %977 = vmatprep.subr.mxu0 0.0
        %978 = vmatpush2.msra.mxu0 0.0
        %979 = vmatprep.subr.mxu0 0.0
        %980 = vmatpush2.msra.mxu0 0.0
        %981 = vmatprep.subr.mxu0 0.0
        %982 = vmatpush2.msra.mxu0 0.0
        %983 = vmatprep.subr.mxu0 0.0
        %984 = vmatpush2.msra.mxu0 0.0
        %985 = vmatprep.subr.mxu0 0.0
        %986 = vmatpush2.msra.mxu0 0.0
        %987 = vmatprep.subr.mxu0 0.0
        %988 = vmatpush2.msra.mxu0 0.0
        %989 = vmatprep.subr.mxu0 0.0
        %990 = vmatpush2.msra.mxu0 0.0
        %991 = vmatprep.subr.mxu0 0.0
        %992 = vmatpush2.msra.mxu0 0.0
        %993 = vmatprep.subr.mxu0 0.0
        %994 = vmatpush2.msra.mxu0 0.0
        %995 = vmatprep.subr.mxu0 0.0
        %996 = vmatpush2.msra.mxu0 0.0
        %997 = vmatprep.subr.mxu0 0.0
        %998 = vmatpush2.msra.mxu0 0.0
        %999 = vmatprep.subr.mxu0 0.0
        %1000 = vmatpush2.msra.mxu0 0.0
        %1001 = vmatprep.subr.mxu0 0.0
        %1002 = vmatpush2.msra.mxu0 0.0
        %1003 = vmatprep.subr.mxu0 0.0
        %1004 = vmatpush2.msra.mxu0 0.0
        %1005 = vmatprep.subr.mxu0 0.0
        %1006 = vmatpush2.msra.mxu0 0.0
        %1007 = vmatprep.subr.mxu0 0.0
        %1008 = vmatpush2.msra.mxu0 0.0
        %1009 = vmatprep.mubr.f32.mxu0 0.0
        %1010 = vmatmul.mubr.f32.gmra.mxu0 %v943
        %v1011 = vpop.f32.mrf.mxu0
        %v1012 = vadd.f32 0.0, %v1011
        %v1013 = vpop.f32.mrf.mxu0
        %1014 = vdwg.mxu0
        %1016 = vrot.lane.b32.xlu0 %v1012, 16
        %v1017 = vpop.permute.xlu0 %1016
        %vm1019 = vcmask 261248
        %1020 = vst.msk [vmem:[#allocation2] sm:$0xff] %vm1019, %v1017
        %1021 = vrot.lane.b32.xlu0 %v497, 96
        %v1022 = vpop.permute.xlu0 %1021
        %1023 = vrot.lane.b32.xlu0 %v590, 96
        %v1024 = vpop.permute.xlu0 %1023
        %v1025 = vsel %vm686, %v1022, 0
        %v1027 = vsel %vm686, %v1024, 0
        %1029 = vmatprep.subr.mxu0 0.0
        %1030 = vmatpush1.xpose.msra.mxu0 0.0
        %1031 = vmatprep.subr.mxu0 0.0
        %1032 = vmatpush1.xpose.msra.mxu0 0.0
        %1033 = vmatprep.subr.mxu0 0.0
        %1034 = vmatpush1.xpose.msra.mxu0 0.0
        %1035 = vmatprep.subr.mxu0 0.0
        %1036 = vmatpush1.xpose.msra.mxu0 0.0
        %1037 = vmatprep.subr.mxu0 0.0
        %1038 = vmatpush1.xpose.msra.mxu0 0.0
        %1039 = vmatprep.subr.mxu0 0.0
        %1040 = vmatpush1.xpose.msra.mxu0 0.0
        %1041 = vmatprep.subr.mxu0 0.0
        %1042 = vmatpush1.xpose.msra.mxu0 0.0
        %1043 = vmatprep.subr.mxu0 0.0
        %1044 = vmatpush1.xpose.msra.mxu0 0.0
        %1045 = vmatprep.subr.mxu0 0.0
        %1046 = vmatpush1.xpose.msra.mxu0 0.0
        %1047 = vmatprep.subr.mxu0 0.0
        %1048 = vmatpush1.xpose.msra.mxu0 0.0
        %1049 = vmatprep.subr.mxu0 0.0
        %1050 = vmatpush1.xpose.msra.mxu0 0.0
        %1051 = vmatprep.subr.mxu0 0.0
        %1052 = vmatpush1.xpose.msra.mxu0 0.0
        %1053 = vmatprep.subr.mxu0 0.0
        %1054 = vmatpush1.xpose.msra.mxu0 0.0
        %1055 = vmatprep.subr.mxu0 0.0
        %1056 = vmatpush1.xpose.msra.mxu0 0.0
        %1057 = vmatprep.subr.mxu0 0.0
        %1058 = vmatpush1.xpose.msra.mxu0 0.0
        %1059 = vmatprep.subr.mxu0 0.0
        %1060 = vmatpush1.xpose.msra.mxu0 %v1027
        %1061 = vmatprep.subr.mxu0 0.0
        %1062 = vmatpush2.xpose.msra.mxu0 0.0
        %1063 = vmatprep.subr.mxu0 0.0
        %1064 = vmatpush2.xpose.msra.mxu0 0.0
        %1065 = vmatprep.subr.mxu0 0.0
        %1066 = vmatpush2.xpose.msra.mxu0 0.0
        %1067 = vmatprep.subr.mxu0 0.0
        %1068 = vmatpush2.xpose.msra.mxu0 0.0
        %1069 = vmatprep.subr.mxu0 0.0
        %1070 = vmatpush2.xpose.msra.mxu0 0.0
        %1071 = vmatprep.subr.mxu0 0.0
        %1072 = vmatpush2.xpose.msra.mxu0 0.0
        %1073 = vmatprep.subr.mxu0 0.0
        %1074 = vmatpush2.xpose.msra.mxu0 0.0
        %1075 = vmatprep.subr.mxu0 0.0
        %1076 = vmatpush2.xpose.msra.mxu0 0.0
        %1077 = vmatprep.subr.mxu0 0.0
        %1078 = vmatpush2.xpose.msra.mxu0 0.0
        %1079 = vmatprep.subr.mxu0 0.0
        %1080 = vmatpush2.xpose.msra.mxu0 0.0
        %1081 = vmatprep.subr.mxu0 0.0
        %1082 = vmatpush2.xpose.msra.mxu0 0.0
        %1083 = vmatprep.subr.mxu0 0.0
        %1084 = vmatpush2.xpose.msra.mxu0 0.0
        %1085 = vmatprep.subr.mxu0 0.0
        %1086 = vmatpush2.xpose.msra.mxu0 0.0
        %1087 = vmatprep.subr.mxu0 0.0
        %1088 = vmatpush2.xpose.msra.mxu0 0.0
        %1089 = vmatprep.subr.mxu0 0.0
        %1090 = vmatpush2.xpose.msra.mxu0 0.0
        %1091 = vmatprep.subr.mxu0 0.0
        %1092 = vmatpush2.xpose.msra.mxu0 0.0
        %1093 = vmatprep.mubr.f32.mxu0 0.0
        %1094 = vmatmul.mubr.f32.gmra.mxu0 %v1025
        %v1095 = vpop.f32.mrf.mxu0
        %v1096 = vadd.f32 0.0, %v1095
        %v1097 = vpop.f32.mrf.mxu0
        %1098 = vdwg.mxu0
        %v1099 = vsel %vm763, %v1096, -inf
        %1100 = vmax.xlane.f32.xlu0 %v1099
        %v1101 = vpop.xlane.xlu0 %1100
        %v1102 = vsub.f32 %v1096, %v1101
        %v1103 = vmul.f32 %v1102, 1.442695
        %v1104 = vpow.pop %v1103
        %v1105 = vsel %vm763, %v1104, 0.0
        %1106 = vadd.xlane.f32.xlu0 %v1105
        %v1107 = vpop.xlane.xlu0 %1106
        %v1108 = vrcp.pop %v1107
        %v1109 = vmul.f32 %v1104, %v1108
        %1110 = vrot.lane.b32.xlu0 %v683, 96
        %v1111 = vpop.permute.xlu0 %1110
        %v1114 = vsel %vm763, %v1109, 0
        %1116 = vmatprep.subr.mxu0 0.0
        %1117 = vmatpush1.msra.mxu0 0.0
        %1118 = vmatprep.subr.mxu0 0.0
        %1119 = vmatpush1.msra.mxu0 0.0
        %1120 = vmatprep.subr.mxu0 0.0
        %1121 = vmatpush1.msra.mxu0 0.0
        %1122 = vmatprep.subr.mxu0 0.0
        %1123 = vmatpush1.msra.mxu0 0.0
        %1124 = vmatprep.subr.mxu0 0.0
        %1125 = vmatpush1.msra.mxu0 0.0
        %1126 = vmatprep.subr.mxu0 0.0
        %1127 = vmatpush1.msra.mxu0 0.0
        %1128 = vmatprep.subr.mxu0 0.0
        %1129 = vmatpush1.msra.mxu0 0.0
        %1130 = vmatprep.subr.mxu0 0.0
        %1131 = vmatpush1.msra.mxu0 0.0
        %1132 = vmatprep.subr.mxu0 0.0
        %1133 = vmatpush1.msra.mxu0 0.0
        %1134 = vmatprep.subr.mxu0 0.0
        %1135 = vmatpush1.msra.mxu0 0.0
        %1136 = vmatprep.subr.mxu0 0.0
        %1137 = vmatpush1.msra.mxu0 0.0
        %1138 = vmatprep.subr.mxu0 0.0
        %1139 = vmatpush1.msra.mxu0 0.0
        %1140 = vmatprep.subr.mxu0 0.0
        %1141 = vmatpush1.msra.mxu0 0.0
        %1142 = vmatprep.subr.mxu0 0.0
        %1143 = vmatpush1.msra.mxu0 0.0
        %1144 = vmatprep.subr.mxu0 0.0
        %1145 = vmatpush1.msra.mxu0 0.0
        %1146 = vmatprep.subr.mxu0 0.0
        %1147 = vmatpush1.msra.mxu0 %v1111
        %1148 = vmatprep.subr.mxu0 0.0
        %1149 = vmatpush2.msra.mxu0 0.0
        %1150 = vmatprep.subr.mxu0 0.0
        %1151 = vmatpush2.msra.mxu0 0.0
        %1152 = vmatprep.subr.mxu0 0.0
        %1153 = vmatpush2.msra.mxu0 0.0
        %1154 = vmatprep.subr.mxu0 0.0
        %1155 = vmatpush2.msra.mxu0 0.0
        %1156 = vmatprep.subr.mxu0 0.0
        %1157 = vmatpush2.msra.mxu0 0.0
        %1158 = vmatprep.subr.mxu0 0.0
        %1159 = vmatpush2.msra.mxu0 0.0
        %1160 = vmatprep.subr.mxu0 0.0
        %1161 = vmatpush2.msra.mxu0 0.0
        %1162 = vmatprep.subr.mxu0 0.0
        %1163 = vmatpush2.msra.mxu0 0.0
        %1164 = vmatprep.subr.mxu0 0.0
        %1165 = vmatpush2.msra.mxu0 0.0
        %1166 = vmatprep.subr.mxu0 0.0
        %1167 = vmatpush2.msra.mxu0 0.0
        %1168 = vmatprep.subr.mxu0 0.0
        %1169 = vmatpush2.msra.mxu0 0.0
        %1170 = vmatprep.subr.mxu0 0.0
        %1171 = vmatpush2.msra.mxu0 0.0
        %1172 = vmatprep.subr.mxu0 0.0
        %1173 = vmatpush2.msra.mxu0 0.0
        %1174 = vmatprep.subr.mxu0 0.0
        %1175 = vmatpush2.msra.mxu0 0.0
        %1176 = vmatprep.subr.mxu0 0.0
        %1177 = vmatpush2.msra.mxu0 0.0
        %1178 = vmatprep.subr.mxu0 0.0
        %1179 = vmatpush2.msra.mxu0 0.0
        %1180 = vmatprep.mubr.f32.mxu0 0.0
        %1181 = vmatmul.mubr.f32.gmra.mxu0 %v1114
        %v1182 = vpop.f32.mrf.mxu0
        %v1183 = vadd.f32 0.0, %v1182
        %v1184 = vpop.f32.mrf.mxu0
        %1185 = vdwg.mxu0
        %1187 = vrot.lane.b32.xlu0 %v1183, 32
        %v1188 = vpop.permute.xlu0 %1187
        %vm1190 = vcmask 392448
        %1191 = vst.msk [vmem:[#allocation2] sm:$0xff] %vm1190, %v1188
        %1192 = vrot.lane.b32.xlu0 %v497, 80
        %v1193 = vpop.permute.xlu0 %1192
        %1194 = vrot.lane.b32.xlu0 %v590, 80
        %v1195 = vpop.permute.xlu0 %1194
        %v1196 = vsel %vm686, %v1193, 0
        %v1198 = vsel %vm686, %v1195, 0
        %1200 = vmatprep.subr.mxu0 0.0
        %1201 = vmatpush1.xpose.msra.mxu0 0.0
        %1202 = vmatprep.subr.mxu0 0.0
        %1203 = vmatpush1.xpose.msra.mxu0 0.0
        %1204 = vmatprep.subr.mxu0 0.0
        %1205 = vmatpush1.xpose.msra.mxu0 0.0
        %1206 = vmatprep.subr.mxu0 0.0
        %1207 = vmatpush1.xpose.msra.mxu0 0.0
        %1208 = vmatprep.subr.mxu0 0.0
        %1209 = vmatpush1.xpose.msra.mxu0 0.0
        %1210 = vmatprep.subr.mxu0 0.0
        %1211 = vmatpush1.xpose.msra.mxu0 0.0
        %1212 = vmatprep.subr.mxu0 0.0
        %1213 = vmatpush1.xpose.msra.mxu0 0.0
        %1214 = vmatprep.subr.mxu0 0.0
        %1215 = vmatpush1.xpose.msra.mxu0 0.0
        %1216 = vmatprep.subr.mxu0 0.0
        %1217 = vmatpush1.xpose.msra.mxu0 0.0
        %1218 = vmatprep.subr.mxu0 0.0
        %1219 = vmatpush1.xpose.msra.mxu0 0.0
        %1220 = vmatprep.subr.mxu0 0.0
        %1221 = vmatpush1.xpose.msra.mxu0 0.0
        %1222 = vmatprep.subr.mxu0 0.0
        %1223 = vmatpush1.xpose.msra.mxu0 0.0
        %1224 = vmatprep.subr.mxu0 0.0
        %1225 = vmatpush1.xpose.msra.mxu0 0.0
        %1226 = vmatprep.subr.mxu0 0.0
        %1227 = vmatpush1.xpose.msra.mxu0 0.0
        %1228 = vmatprep.subr.mxu0 0.0
        %1229 = vmatpush1.xpose.msra.mxu0 0.0
        %1230 = vmatprep.subr.mxu0 0.0
        %1231 = vmatpush1.xpose.msra.mxu0 %v1198
        %1232 = vmatprep.subr.mxu0 0.0
        %1233 = vmatpush2.xpose.msra.mxu0 0.0
        %1234 = vmatprep.subr.mxu0 0.0
        %1235 = vmatpush2.xpose.msra.mxu0 0.0
        %1236 = vmatprep.subr.mxu0 0.0
        %1237 = vmatpush2.xpose.msra.mxu0 0.0
        %1238 = vmatprep.subr.mxu0 0.0
        %1239 = vmatpush2.xpose.msra.mxu0 0.0
        %1240 = vmatprep.subr.mxu0 0.0
        %1241 = vmatpush2.xpose.msra.mxu0 0.0
        %1242 = vmatprep.subr.mxu0 0.0
        %1243 = vmatpush2.xpose.msra.mxu0 0.0
        %1244 = vmatprep.subr.mxu0 0.0
        %1245 = vmatpush2.xpose.msra.mxu0 0.0
        %1246 = vmatprep.subr.mxu0 0.0
        %1247 = vmatpush2.xpose.msra.mxu0 0.0
        %1248 = vmatprep.subr.mxu0 0.0
        %1249 = vmatpush2.xpose.msra.mxu0 0.0
        %1250 = vmatprep.subr.mxu0 0.0
        %1251 = vmatpush2.xpose.msra.mxu0 0.0
        %1252 = vmatprep.subr.mxu0 0.0
        %1253 = vmatpush2.xpose.msra.mxu0 0.0
        %1254 = vmatprep.subr.mxu0 0.0
        %1255 = vmatpush2.xpose.msra.mxu0 0.0
        %1256 = vmatprep.subr.mxu0 0.0
        %1257 = vmatpush2.xpose.msra.mxu0 0.0
        %1258 = vmatprep.subr.mxu0 0.0
        %1259 = vmatpush2.xpose.msra.mxu0 0.0
        %1260 = vmatprep.subr.mxu0 0.0
        %1261 = vmatpush2.xpose.msra.mxu0 0.0
        %1262 = vmatprep.subr.mxu0 0.0
        %1263 = vmatpush2.xpose.msra.mxu0 0.0
        %1264 = vmatprep.mubr.f32.mxu0 0.0
        %1265 = vmatmul.mubr.f32.gmra.mxu0 %v1196
        %v1266 = vpop.f32.mrf.mxu0
        %v1267 = vadd.f32 0.0, %v1266
        %v1268 = vpop.f32.mrf.mxu0
        %1269 = vdwg.mxu0
        %v1270 = vsel %vm763, %v1267, -inf
        %1271 = vmax.xlane.f32.xlu0 %v1270
        %v1272 = vpop.xlane.xlu0 %1271
        %v1273 = vsub.f32 %v1267, %v1272
        %v1274 = vmul.f32 %v1273, 1.442695
        %v1275 = vpow.pop %v1274
        %v1276 = vsel %vm763, %v1275, 0.0
        %1277 = vadd.xlane.f32.xlu0 %v1276
        %v1278 = vpop.xlane.xlu0 %1277
        %v1279 = vrcp.pop %v1278
        %v1280 = vmul.f32 %v1275, %v1279
        %1281 = vrot.lane.b32.xlu0 %v683, 80
        %v1282 = vpop.permute.xlu0 %1281
        %v1285 = vsel %vm763, %v1280, 0
        %1287 = vmatprep.subr.mxu0 0.0
        %1288 = vmatpush1.msra.mxu0 0.0
        %1289 = vmatprep.subr.mxu0 0.0
        %1290 = vmatpush1.msra.mxu0 0.0
        %1291 = vmatprep.subr.mxu0 0.0
        %1292 = vmatpush1.msra.mxu0 0.0
        %1293 = vmatprep.subr.mxu0 0.0
        %1294 = vmatpush1.msra.mxu0 0.0
        %1295 = vmatprep.subr.mxu0 0.0
        %1296 = vmatpush1.msra.mxu0 0.0
        %1297 = vmatprep.subr.mxu0 0.0
        %1298 = vmatpush1.msra.mxu0 0.0
        %1299 = vmatprep.subr.mxu0 0.0
        %1300 = vmatpush1.msra.mxu0 0.0
        %1301 = vmatprep.subr.mxu0 0.0
        %1302 = vmatpush1.msra.mxu0 0.0
        %1303 = vmatprep.subr.mxu0 0.0
        %1304 = vmatpush1.msra.mxu0 0.0
        %1305 = vmatprep.subr.mxu0 0.0
        %1306 = vmatpush1.msra.mxu0 0.0
        %1307 = vmatprep.subr.mxu0 0.0
        %1308 = vmatpush1.msra.mxu0 0.0
        %1309 = vmatprep.subr.mxu0 0.0
        %1310 = vmatpush1.msra.mxu0 0.0
        %1311 = vmatprep.subr.mxu0 0.0
        %1312 = vmatpush1.msra.mxu0 0.0
        %1313 = vmatprep.subr.mxu0 0.0
        %1314 = vmatpush1.msra.mxu0 0.0
        %1315 = vmatprep.subr.mxu0 0.0
        %1316 = vmatpush1.msra.mxu0 0.0
        %1317 = vmatprep.subr.mxu0 0.0
        %1318 = vmatpush1.msra.mxu0 %v1282
        %1319 = vmatprep.subr.mxu0 0.0
        %1320 = vmatpush2.msra.mxu0 0.0
        %1321 = vmatprep.subr.mxu0 0.0
        %1322 = vmatpush2.msra.mxu0 0.0
        %1323 = vmatprep.subr.mxu0 0.0
        %1324 = vmatpush2.msra.mxu0 0.0
        %1325 = vmatprep.subr.mxu0 0.0
        %1326 = vmatpush2.msra.mxu0 0.0
        %1327 = vmatprep.subr.mxu0 0.0
        %1328 = vmatpush2.msra.mxu0 0.0
        %1329 = vmatprep.subr.mxu0 0.0
        %1330 = vmatpush2.msra.mxu0 0.0
        %1331 = vmatprep.subr.mxu0 0.0
        %1332 = vmatpush2.msra.mxu0 0.0
        %1333 = vmatprep.subr.mxu0 0.0
        %1334 = vmatpush2.msra.mxu0 0.0
        %1335 = vmatprep.subr.mxu0 0.0
        %1336 = vmatpush2.msra.mxu0 0.0
        %1337 = vmatprep.subr.mxu0 0.0
        %1338 = vmatpush2.msra.mxu0 0.0
        %1339 = vmatprep.subr.mxu0 0.0
        %1340 = vmatpush2.msra.mxu0 0.0
        %1341 = vmatprep.subr.mxu0 0.0
        %1342 = vmatpush2.msra.mxu0 0.0
        %1343 = vmatprep.subr.mxu0 0.0
        %1344 = vmatpush2.msra.mxu0 0.0
        %1345 = vmatprep.subr.mxu0 0.0
        %1346 = vmatpush2.msra.mxu0 0.0
        %1347 = vmatprep.subr.mxu0 0.0
        %1348 = vmatpush2.msra.mxu0 0.0
        %1349 = vmatprep.subr.mxu0 0.0
        %1350 = vmatpush2.msra.mxu0 0.0
        %1351 = vmatprep.mubr.f32.mxu0 0.0
        %1352 = vmatmul.mubr.f32.gmra.mxu0 %v1285
        %v1353 = vpop.f32.mrf.mxu0
        %v1354 = vadd.f32 0.0, %v1353
        %v1355 = vpop.f32.mrf.mxu0
        %1356 = vdwg.mxu0
        %1358 = vrot.lane.b32.xlu0 %v1354, 48
        %v1359 = vpop.permute.xlu0 %1358
        %vm1361 = vcmask 523648
        %1362 = vst.msk [vmem:[#allocation2] sm:$0xff] %vm1361, %v1359
        %1363 = vrot.lane.b32.xlu0 %v497, 64
        %v1364 = vpop.permute.xlu0 %1363
        %1365 = vrot.lane.b32.xlu0 %v590, 64
        %v1366 = vpop.permute.xlu0 %1365
        %v1367 = vsel %vm686, %v1364, 0
        %v1369 = vsel %vm686, %v1366, 0
        %1371 = vmatprep.subr.mxu0 0.0
        %1372 = vmatpush1.xpose.msra.mxu0 0.0
        %1373 = vmatprep.subr.mxu0 0.0
        %1374 = vmatpush1.xpose.msra.mxu0 0.0
        %1375 = vmatprep.subr.mxu0 0.0
        %1376 = vmatpush1.xpose.msra.mxu0 0.0
        %1377 = vmatprep.subr.mxu0 0.0
        %1378 = vmatpush1.xpose.msra.mxu0 0.0
        %1379 = vmatprep.subr.mxu0 0.0
        %1380 = vmatpush1.xpose.msra.mxu0 0.0
        %1381 = vmatprep.subr.mxu0 0.0
        %1382 = vmatpush1.xpose.msra.mxu0 0.0
        %1383 = vmatprep.subr.mxu0 0.0
        %1384 = vmatpush1.xpose.msra.mxu0 0.0
        %1385 = vmatprep.subr.mxu0 0.0
        %1386 = vmatpush1.xpose.msra.mxu0 0.0
        %1387 = vmatprep.subr.mxu0 0.0
        %1388 = vmatpush1.xpose.msra.mxu0 0.0
        %1389 = vmatprep.subr.mxu0 0.0
        %1390 = vmatpush1.xpose.msra.mxu0 0.0
        %1391 = vmatprep.subr.mxu0 0.0
        %1392 = vmatpush1.xpose.msra.mxu0 0.0
        %1393 = vmatprep.subr.mxu0 0.0
        %1394 = vmatpush1.xpose.msra.mxu0 0.0
        %1395 = vmatprep.subr.mxu0 0.0
        %1396 = vmatpush1.xpose.msra.mxu0 0.0
        %1397 = vmatprep.subr.mxu0 0.0
        %1398 = vmatpush1.xpose.msra.mxu0 0.0
        %1399 = vmatprep.subr.mxu0 0.0
        %1400 = vmatpush1.xpose.msra.mxu0 0.0
        %1401 = vmatprep.subr.mxu0 0.0
        %1402 = vmatpush1.xpose.msra.mxu0 %v1369
        %1403 = vmatprep.subr.mxu0 0.0
        %1404 = vmatpush2.xpose.msra.mxu0 0.0
        %1405 = vmatprep.subr.mxu0 0.0
        %1406 = vmatpush2.xpose.msra.mxu0 0.0
        %1407 = vmatprep.subr.mxu0 0.0
        %1408 = vmatpush2.xpose.msra.mxu0 0.0
        %1409 = vmatprep.subr.mxu0 0.0
        %1410 = vmatpush2.xpose.msra.mxu0 0.0
        %1411 = vmatprep.subr.mxu0 0.0
        %1412 = vmatpush2.xpose.msra.mxu0 0.0
        %1413 = vmatprep.subr.mxu0 0.0
        %1414 = vmatpush2.xpose.msra.mxu0 0.0
        %1415 = vmatprep.subr.mxu0 0.0
        %1416 = vmatpush2.xpose.msra.mxu0 0.0
        %1417 = vmatprep.subr.mxu0 0.0
        %1418 = vmatpush2.xpose.msra.mxu0 0.0
        %1419 = vmatprep.subr.mxu0 0.0
        %1420 = vmatpush2.xpose.msra.mxu0 0.0
        %1421 = vmatprep.subr.mxu0 0.0
        %1422 = vmatpush2.xpose.msra.mxu0 0.0
        %1423 = vmatprep.subr.mxu0 0.0
        %1424 = vmatpush2.xpose.msra.mxu0 0.0
        %1425 = vmatprep.subr.mxu0 0.0
        %1426 = vmatpush2.xpose.msra.mxu0 0.0
        %1427 = vmatprep.subr.mxu0 0.0
        %1428 = vmatpush2.xpose.msra.mxu0 0.0
        %1429 = vmatprep.subr.mxu0 0.0
        %1430 = vmatpush2.xpose.msra.mxu0 0.0
        %1431 = vmatprep.subr.mxu0 0.0
        %1432 = vmatpush2.xpose.msra.mxu0 0.0
        %1433 = vmatprep.subr.mxu0 0.0
        %1434 = vmatpush2.xpose.msra.mxu0 0.0
        %1435 = vmatprep.mubr.f32.mxu0 0.0
        %1436 = vmatmul.mubr.f32.gmra.mxu0 %v1367
        %v1437 = vpop.f32.mrf.mxu0
        %v1438 = vadd.f32 0.0, %v1437
        %v1439 = vpop.f32.mrf.mxu0
        %1440 = vdwg.mxu0
        %v1441 = vsel %vm763, %v1438, -inf
        %1442 = vmax.xlane.f32.xlu0 %v1441
        %v1443 = vpop.xlane.xlu0 %1442
        %v1444 = vsub.f32 %v1438, %v1443
        %v1445 = vmul.f32 %v1444, 1.442695
        %v1446 = vpow.pop %v1445
        %v1447 = vsel %vm763, %v1446, 0.0
        %1448 = vadd.xlane.f32.xlu0 %v1447
        %v1449 = vpop.xlane.xlu0 %1448
        %v1450 = vrcp.pop %v1449
        %v1451 = vmul.f32 %v1446, %v1450
        %1452 = vrot.lane.b32.xlu0 %v683, 64
        %v1453 = vpop.permute.xlu0 %1452
        %v1456 = vsel %vm763, %v1451, 0
        %1458 = vmatprep.subr.mxu0 0.0
        %1459 = vmatpush1.msra.mxu0 0.0
        %1460 = vmatprep.subr.mxu0 0.0
        %1461 = vmatpush1.msra.mxu0 0.0
        %1462 = vmatprep.subr.mxu0 0.0
        %1463 = vmatpush1.msra.mxu0 0.0
        %1464 = vmatprep.subr.mxu0 0.0
        %1465 = vmatpush1.msra.mxu0 0.0
        %1466 = vmatprep.subr.mxu0 0.0
        %1467 = vmatpush1.msra.mxu0 0.0
        %1468 = vmatprep.subr.mxu0 0.0
        %1469 = vmatpush1.msra.mxu0 0.0
        %1470 = vmatprep.subr.mxu0 0.0
        %1471 = vmatpush1.msra.mxu0 0.0
        %1472 = vmatprep.subr.mxu0 0.0
        %1473 = vmatpush1.msra.mxu0 0.0
        %1474 = vmatprep.subr.mxu0 0.0
        %1475 = vmatpush1.msra.mxu0 0.0
        %1476 = vmatprep.subr.mxu0 0.0
        %1477 = vmatpush1.msra.mxu0 0.0
        %1478 = vmatprep.subr.mxu0 0.0
        %1479 = vmatpush1.msra.mxu0 0.0
        %1480 = vmatprep.subr.mxu0 0.0
        %1481 = vmatpush1.msra.mxu0 0.0
        %1482 = vmatprep.subr.mxu0 0.0
        %1483 = vmatpush1.msra.mxu0 0.0
        %1484 = vmatprep.subr.mxu0 0.0
        %1485 = vmatpush1.msra.mxu0 0.0
        %1486 = vmatprep.subr.mxu0 0.0
        %1487 = vmatpush1.msra.mxu0 0.0
        %1488 = vmatprep.subr.mxu0 0.0
        %1489 = vmatpush1.msra.mxu0 %v1453
        %1490 = vmatprep.subr.mxu0 0.0
        %1491 = vmatpush2.msra.mxu0 0.0
        %1492 = vmatprep.subr.mxu0 0.0
        %1493 = vmatpush2.msra.mxu0 0.0
        %1494 = vmatprep.subr.mxu0 0.0
        %1495 = vmatpush2.msra.mxu0 0.0
        %1496 = vmatprep.subr.mxu0 0.0
        %1497 = vmatpush2.msra.mxu0 0.0
        %1498 = vmatprep.subr.mxu0 0.0
        %1499 = vmatpush2.msra.mxu0 0.0
        %1500 = vmatprep.subr.mxu0 0.0
        %1501 = vmatpush2.msra.mxu0 0.0
        %1502 = vmatprep.subr.mxu0 0.0
        %1503 = vmatpush2.msra.mxu0 0.0
        %1504 = vmatprep.subr.mxu0 0.0
        %1505 = vmatpush2.msra.mxu0 0.0
        %1506 = vmatprep.subr.mxu0 0.0
        %1507 = vmatpush2.msra.mxu0 0.0
        %1508 = vmatprep.subr.mxu0 0.0
        %1509 = vmatpush2.msra.mxu0 0.0
        %1510 = vmatprep.subr.mxu0 0.0
        %1511 = vmatpush2.msra.mxu0 0.0
        %1512 = vmatprep.subr.mxu0 0.0
        %1513 = vmatpush2.msra.mxu0 0.0
        %1514 = vmatprep.subr.mxu0 0.0
        %1515 = vmatpush2.msra.mxu0 0.0
        %1516 = vmatprep.subr.mxu0 0.0
        %1517 = vmatpush2.msra.mxu0 0.0
        %1518 = vmatprep.subr.mxu0 0.0
        %1519 = vmatpush2.msra.mxu0 0.0
        %1520 = vmatprep.subr.mxu0 0.0
        %1521 = vmatpush2.msra.mxu0 0.0
        %1522 = vmatprep.mubr.f32.mxu0 0.0
        %1523 = vmatmul.mubr.f32.gmra.mxu0 %v1456
        %v1524 = vpop.f32.mrf.mxu0
        %v1525 = vadd.f32 0.0, %v1524
        %v1526 = vpop.f32.mrf.mxu0
        %1527 = vdwg.mxu0
        %1529 = vrot.lane.b32.xlu0 %v1525, 64
        %v1530 = vpop.permute.xlu0 %1529
        %vm1532 = vcmask 654848
        %1533 = vst.msk [vmem:[#allocation2] sm:$0xff] %vm1532, %v1530
        %1534 = vrot.lane.b32.xlu0 %v497, 48
        %v1535 = vpop.permute.xlu0 %1534
        %1536 = vrot.lane.b32.xlu0 %v590, 48
        %v1537 = vpop.permute.xlu0 %1536
        %v1538 = vsel %vm686, %v1535, 0
        %v1540 = vsel %vm686, %v1537, 0
        %1542 = vmatprep.subr.mxu0 0.0
        %1543 = vmatpush1.xpose.msra.mxu0 0.0
        %1544 = vmatprep.subr.mxu0 0.0
        %1545 = vmatpush1.xpose.msra.mxu0 0.0
        %1546 = vmatprep.subr.mxu0 0.0
        %1547 = vmatpush1.xpose.msra.mxu0 0.0
        %1548 = vmatprep.subr.mxu0 0.0
        %1549 = vmatpush1.xpose.msra.mxu0 0.0
        %1550 = vmatprep.subr.mxu0 0.0
        %1551 = vmatpush1.xpose.msra.mxu0 0.0
        %1552 = vmatprep.subr.mxu0 0.0
        %1553 = vmatpush1.xpose.msra.mxu0 0.0
        %1554 = vmatprep.subr.mxu0 0.0
        %1555 = vmatpush1.xpose.msra.mxu0 0.0
        %1556 = vmatprep.subr.mxu0 0.0
        %1557 = vmatpush1.xpose.msra.mxu0 0.0
        %1558 = vmatprep.subr.mxu0 0.0
        %1559 = vmatpush1.xpose.msra.mxu0 0.0
        %1560 = vmatprep.subr.mxu0 0.0
        %1561 = vmatpush1.xpose.msra.mxu0 0.0
        %1562 = vmatprep.subr.mxu0 0.0
        %1563 = vmatpush1.xpose.msra.mxu0 0.0
        %1564 = vmatprep.subr.mxu0 0.0
        %1565 = vmatpush1.xpose.msra.mxu0 0.0
        %1566 = vmatprep.subr.mxu0 0.0
        %1567 = vmatpush1.xpose.msra.mxu0 0.0
        %1568 = vmatprep.subr.mxu0 0.0
        %1569 = vmatpush1.xpose.msra.mxu0 0.0
        %1570 = vmatprep.subr.mxu0 0.0
        %1571 = vmatpush1.xpose.msra.mxu0 0.0
        %1572 = vmatprep.subr.mxu0 0.0
        %1573 = vmatpush1.xpose.msra.mxu0 %v1540
        %1574 = vmatprep.subr.mxu0 0.0
        %1575 = vmatpush2.xpose.msra.mxu0 0.0
        %1576 = vmatprep.subr.mxu0 0.0
        %1577 = vmatpush2.xpose.msra.mxu0 0.0
        %1578 = vmatprep.subr.mxu0 0.0
        %1579 = vmatpush2.xpose.msra.mxu0 0.0
        %1580 = vmatprep.subr.mxu0 0.0
        %1581 = vmatpush2.xpose.msra.mxu0 0.0
        %1582 = vmatprep.subr.mxu0 0.0
        %1583 = vmatpush2.xpose.msra.mxu0 0.0
        %1584 = vmatprep.subr.mxu0 0.0
        %1585 = vmatpush2.xpose.msra.mxu0 0.0
        %1586 = vmatprep.subr.mxu0 0.0
        %1587 = vmatpush2.xpose.msra.mxu0 0.0
        %1588 = vmatprep.subr.mxu0 0.0
        %1589 = vmatpush2.xpose.msra.mxu0 0.0
        %1590 = vmatprep.subr.mxu0 0.0
        %1591 = vmatpush2.xpose.msra.mxu0 0.0
        %1592 = vmatprep.subr.mxu0 0.0
        %1593 = vmatpush2.xpose.msra.mxu0 0.0
        %1594 = vmatprep.subr.mxu0 0.0
        %1595 = vmatpush2.xpose.msra.mxu0 0.0
        %1596 = vmatprep.subr.mxu0 0.0
        %1597 = vmatpush2.xpose.msra.mxu0 0.0
        %1598 = vmatprep.subr.mxu0 0.0
        %1599 = vmatpush2.xpose.msra.mxu0 0.0
        %1600 = vmatprep.subr.mxu0 0.0
        %1601 = vmatpush2.xpose.msra.mxu0 0.0
        %1602 = vmatprep.subr.mxu0 0.0
        %1603 = vmatpush2.xpose.msra.mxu0 0.0
        %1604 = vmatprep.subr.mxu0 0.0
        %1605 = vmatpush2.xpose.msra.mxu0 0.0
        %1606 = vmatprep.mubr.f32.mxu0 0.0
        %1607 = vmatmul.mubr.f32.gmra.mxu0 %v1538
        %v1608 = vpop.f32.mrf.mxu0
        %v1609 = vadd.f32 0.0, %v1608
        %v1610 = vpop.f32.mrf.mxu0
        %1611 = vdwg.mxu0
        %v1612 = vsel %vm763, %v1609, -inf
        %1613 = vmax.xlane.f32.xlu0 %v1612
        %v1614 = vpop.xlane.xlu0 %1613
        %v1615 = vsub.f32 %v1609, %v1614
        %v1616 = vmul.f32 %v1615, 1.442695
        %v1617 = vpow.pop %v1616
        %v1618 = vsel %vm763, %v1617, 0.0
        %1619 = vadd.xlane.f32.xlu0 %v1618
        %v1620 = vpop.xlane.xlu0 %1619
        %v1621 = vrcp.pop %v1620
        %v1622 = vmul.f32 %v1617, %v1621
        %1623 = vrot.lane.b32.xlu0 %v683, 48
        %v1624 = vpop.permute.xlu0 %1623
        %v1627 = vsel %vm763, %v1622, 0
        %1629 = vmatprep.subr.mxu0 0.0
        %1630 = vmatpush1.msra.mxu0 0.0
        %1631 = vmatprep.subr.mxu0 0.0
        %1632 = vmatpush1.msra.mxu0 0.0
        %1633 = vmatprep.subr.mxu0 0.0
        %1634 = vmatpush1.msra.mxu0 0.0
        %1635 = vmatprep.subr.mxu0 0.0
        %1636 = vmatpush1.msra.mxu0 0.0
        %1637 = vmatprep.subr.mxu0 0.0
        %1638 = vmatpush1.msra.mxu0 0.0
        %1639 = vmatprep.subr.mxu0 0.0
        %1640 = vmatpush1.msra.mxu0 0.0
        %1641 = vmatprep.subr.mxu0 0.0
        %1642 = vmatpush1.msra.mxu0 0.0
        %1643 = vmatprep.subr.mxu0 0.0
        %1644 = vmatpush1.msra.mxu0 0.0
        %1645 = vmatprep.subr.mxu0 0.0
        %1646 = vmatpush1.msra.mxu0 0.0
        %1647 = vmatprep.subr.mxu0 0.0
        %1648 = vmatpush1.msra.mxu0 0.0
        %1649 = vmatprep.subr.mxu0 0.0
        %1650 = vmatpush1.msra.mxu0 0.0
        %1651 = vmatprep.subr.mxu0 0.0
        %1652 = vmatpush1.msra.mxu0 0.0
        %1653 = vmatprep.subr.mxu0 0.0
        %1654 = vmatpush1.msra.mxu0 0.0
        %1655 = vmatprep.subr.mxu0 0.0
        %1656 = vmatpush1.msra.mxu0 0.0
        %1657 = vmatprep.subr.mxu0 0.0
        %1658 = vmatpush1.msra.mxu0 0.0
        %1659 = vmatprep.subr.mxu0 0.0
        %1660 = vmatpush1.msra.mxu0 %v1624
        %1661 = vmatprep.subr.mxu0 0.0
        %1662 = vmatpush2.msra.mxu0 0.0
        %1663 = vmatprep.subr.mxu0 0.0
        %1664 = vmatpush2.msra.mxu0 0.0
        %1665 = vmatprep.subr.mxu0 0.0
        %1666 = vmatpush2.msra.mxu0 0.0
        %1667 = vmatprep.subr.mxu0 0.0
        %1668 = vmatpush2.msra.mxu0 0.0
        %1669 = vmatprep.subr.mxu0 0.0
        %1670 = vmatpush2.msra.mxu0 0.0
        %1671 = vmatprep.subr.mxu0 0.0
        %1672 = vmatpush2.msra.mxu0 0.0
        %1673 = vmatprep.subr.mxu0 0.0
        %1674 = vmatpush2.msra.mxu0 0.0
        %1675 = vmatprep.subr.mxu0 0.0
        %1676 = vmatpush2.msra.mxu0 0.0
        %1677 = vmatprep.subr.mxu0 0.0
        %1678 = vmatpush2.msra.mxu0 0.0
        %1679 = vmatprep.subr.mxu0 0.0
        %1680 = vmatpush2.msra.mxu0 0.0
        %1681 = vmatprep.subr.mxu0 0.0
        %1682 = vmatpush2.msra.mxu0 0.0
        %1683 = vmatprep.subr.mxu0 0.0
        %1684 = vmatpush2.msra.mxu0 0.0
        %1685 = vmatprep.subr.mxu0 0.0
        %1686 = vmatpush2.msra.mxu0 0.0
        %1687 = vmatprep.subr.mxu0 0.0
        %1688 = vmatpush2.msra.mxu0 0.0
        %1689 = vmatprep.subr.mxu0 0.0
        %1690 = vmatpush2.msra.mxu0 0.0
        %1691 = vmatprep.subr.mxu0 0.0
        %1692 = vmatpush2.msra.mxu0 0.0
        %1693 = vmatprep.mubr.f32.mxu0 0.0
        %1694 = vmatmul.mubr.f32.gmra.mxu0 %v1627
        %v1695 = vpop.f32.mrf.mxu0
        %v1696 = vadd.f32 0.0, %v1695
        %v1697 = vpop.f32.mrf.mxu0
        %1698 = vdwg.mxu0
        %1700 = vrot.lane.b32.xlu0 %v1696, 80
        %v1701 = vpop.permute.xlu0 %1700
        %vm1703 = vcmask 786048
        %1704 = vst.msk [vmem:[#allocation2] sm:$0xff] %vm1703, %v1701
        %1705 = vrot.lane.b32.xlu0 %v497, 32
        %v1706 = vpop.permute.xlu0 %1705
        %1707 = vrot.lane.b32.xlu0 %v590, 32
        %v1708 = vpop.permute.xlu0 %1707
        %v1709 = vsel %vm686, %v1706, 0
        %v1711 = vsel %vm686, %v1708, 0
        %1713 = vmatprep.subr.mxu0 0.0
        %1714 = vmatpush1.xpose.msra.mxu0 0.0
        %1715 = vmatprep.subr.mxu0 0.0
        %1716 = vmatpush1.xpose.msra.mxu0 0.0
        %1717 = vmatprep.subr.mxu0 0.0
        %1718 = vmatpush1.xpose.msra.mxu0 0.0
        %1719 = vmatprep.subr.mxu0 0.0
        %1720 = vmatpush1.xpose.msra.mxu0 0.0
        %1721 = vmatprep.subr.mxu0 0.0
        %1722 = vmatpush1.xpose.msra.mxu0 0.0
        %1723 = vmatprep.subr.mxu0 0.0
        %1724 = vmatpush1.xpose.msra.mxu0 0.0
        %1725 = vmatprep.subr.mxu0 0.0
        %1726 = vmatpush1.xpose.msra.mxu0 0.0
        %1727 = vmatprep.subr.mxu0 0.0
        %1728 = vmatpush1.xpose.msra.mxu0 0.0
        %1729 = vmatprep.subr.mxu0 0.0
        %1730 = vmatpush1.xpose.msra.mxu0 0.0
        %1731 = vmatprep.subr.mxu0 0.0
        %1732 = vmatpush1.xpose.msra.mxu0 0.0
        %1733 = vmatprep.subr.mxu0 0.0
        %1734 = vmatpush1.xpose.msra.mxu0 0.0
        %1735 = vmatprep.subr.mxu0 0.0
        %1736 = vmatpush1.xpose.msra.mxu0 0.0
        %1737 = vmatprep.subr.mxu0 0.0
        %1738 = vmatpush1.xpose.msra.mxu0 0.0
        %1739 = vmatprep.subr.mxu0 0.0
        %1740 = vmatpush1.xpose.msra.mxu0 0.0
        %1741 = vmatprep.subr.mxu0 0.0
        %1742 = vmatpush1.xpose.msra.mxu0 0.0
        %1743 = vmatprep.subr.mxu0 0.0
        %1744 = vmatpush1.xpose.msra.mxu0 %v1711
        %1745 = vmatprep.subr.mxu0 0.0
        %1746 = vmatpush2.xpose.msra.mxu0 0.0
        %1747 = vmatprep.subr.mxu0 0.0
        %1748 = vmatpush2.xpose.msra.mxu0 0.0
        %1749 = vmatprep.subr.mxu0 0.0
        %1750 = vmatpush2.xpose.msra.mxu0 0.0
        %1751 = vmatprep.subr.mxu0 0.0
        %1752 = vmatpush2.xpose.msra.mxu0 0.0
        %1753 = vmatprep.subr.mxu0 0.0
        %1754 = vmatpush2.xpose.msra.mxu0 0.0
        %1755 = vmatprep.subr.mxu0 0.0
        %1756 = vmatpush2.xpose.msra.mxu0 0.0
        %1757 = vmatprep.subr.mxu0 0.0
        %1758 = vmatpush2.xpose.msra.mxu0 0.0
        %1759 = vmatprep.subr.mxu0 0.0
        %1760 = vmatpush2.xpose.msra.mxu0 0.0
        %1761 = vmatprep.subr.mxu0 0.0
        %1762 = vmatpush2.xpose.msra.mxu0 0.0
        %1763 = vmatprep.subr.mxu0 0.0
        %1764 = vmatpush2.xpose.msra.mxu0 0.0
        %1765 = vmatprep.subr.mxu0 0.0
        %1766 = vmatpush2.xpose.msra.mxu0 0.0
        %1767 = vmatprep.subr.mxu0 0.0
        %1768 = vmatpush2.xpose.msra.mxu0 0.0
        %1769 = vmatprep.subr.mxu0 0.0
        %1770 = vmatpush2.xpose.msra.mxu0 0.0
        %1771 = vmatprep.subr.mxu0 0.0
        %1772 = vmatpush2.xpose.msra.mxu0 0.0
        %1773 = vmatprep.subr.mxu0 0.0
        %1774 = vmatpush2.xpose.msra.mxu0 0.0
        %1775 = vmatprep.subr.mxu0 0.0
        %1776 = vmatpush2.xpose.msra.mxu0 0.0
        %1777 = vmatprep.mubr.f32.mxu0 0.0
        %1778 = vmatmul.mubr.f32.gmra.mxu0 %v1709
        %v1779 = vpop.f32.mrf.mxu0
        %v1780 = vadd.f32 0.0, %v1779
        %v1781 = vpop.f32.mrf.mxu0
        %1782 = vdwg.mxu0
        %v1783 = vsel %vm763, %v1780, -inf
        %1784 = vmax.xlane.f32.xlu0 %v1783
        %v1785 = vpop.xlane.xlu0 %1784
        %v1786 = vsub.f32 %v1780, %v1785
        %v1787 = vmul.f32 %v1786, 1.442695
        %v1788 = vpow.pop %v1787
        %v1789 = vsel %vm763, %v1788, 0.0
        %1790 = vadd.xlane.f32.xlu0 %v1789
        %v1791 = vpop.xlane.xlu0 %1790
        %v1792 = vrcp.pop %v1791
        %v1793 = vmul.f32 %v1788, %v1792
        %1794 = vrot.lane.b32.xlu0 %v683, 32
        %v1795 = vpop.permute.xlu0 %1794
        %v1798 = vsel %vm763, %v1793, 0
        %1800 = vmatprep.subr.mxu0 0.0
        %1801 = vmatpush1.msra.mxu0 0.0
        %1802 = vmatprep.subr.mxu0 0.0
        %1803 = vmatpush1.msra.mxu0 0.0
        %1804 = vmatprep.subr.mxu0 0.0
        %1805 = vmatpush1.msra.mxu0 0.0
        %1806 = vmatprep.subr.mxu0 0.0
        %1807 = vmatpush1.msra.mxu0 0.0
        %1808 = vmatprep.subr.mxu0 0.0
        %1809 = vmatpush1.msra.mxu0 0.0
        %1810 = vmatprep.subr.mxu0 0.0
        %1811 = vmatpush1.msra.mxu0 0.0
        %1812 = vmatprep.subr.mxu0 0.0
        %1813 = vmatpush1.msra.mxu0 0.0
        %1814 = vmatprep.subr.mxu0 0.0
        %1815 = vmatpush1.msra.mxu0 0.0
        %1816 = vmatprep.subr.mxu0 0.0
        %1817 = vmatpush1.msra.mxu0 0.0
        %1818 = vmatprep.subr.mxu0 0.0
        %1819 = vmatpush1.msra.mxu0 0.0
        %1820 = vmatprep.subr.mxu0 0.0
        %1821 = vmatpush1.msra.mxu0 0.0
        %1822 = vmatprep.subr.mxu0 0.0
        %1823 = vmatpush1.msra.mxu0 0.0
        %1824 = vmatprep.subr.mxu0 0.0
        %1825 = vmatpush1.msra.mxu0 0.0
        %1826 = vmatprep.subr.mxu0 0.0
        %1827 = vmatpush1.msra.mxu0 0.0
        %1828 = vmatprep.subr.mxu0 0.0
        %1829 = vmatpush1.msra.mxu0 0.0
        %1830 = vmatprep.subr.mxu0 0.0
        %1831 = vmatpush1.msra.mxu0 %v1795
        %1832 = vmatprep.subr.mxu0 0.0
        %1833 = vmatpush2.msra.mxu0 0.0
        %1834 = vmatprep.subr.mxu0 0.0
        %1835 = vmatpush2.msra.mxu0 0.0
        %1836 = vmatprep.subr.mxu0 0.0
        %1837 = vmatpush2.msra.mxu0 0.0
        %1838 = vmatprep.subr.mxu0 0.0
        %1839 = vmatpush2.msra.mxu0 0.0
        %1840 = vmatprep.subr.mxu0 0.0
        %1841 = vmatpush2.msra.mxu0 0.0
        %1842 = vmatprep.subr.mxu0 0.0
        %1843 = vmatpush2.msra.mxu0 0.0
        %1844 = vmatprep.subr.mxu0 0.0
        %1845 = vmatpush2.msra.mxu0 0.0
        %1846 = vmatprep.subr.mxu0 0.0
        %1847 = vmatpush2.msra.mxu0 0.0
        %1848 = vmatprep.subr.mxu0 0.0
        %1849 = vmatpush2.msra.mxu0 0.0
        %1850 = vmatprep.subr.mxu0 0.0
        %1851 = vmatpush2.msra.mxu0 0.0
        %1852 = vmatprep.subr.mxu0 0.0
        %1853 = vmatpush2.msra.mxu0 0.0
        %1854 = vmatprep.subr.mxu0 0.0
        %1855 = vmatpush2.msra.mxu0 0.0
        %1856 = vmatprep.subr.mxu0 0.0
        %1857 = vmatpush2.msra.mxu0 0.0
        %1858 = vmatprep.subr.mxu0 0.0
        %1859 = vmatpush2.msra.mxu0 0.0
        %1860 = vmatprep.subr.mxu0 0.0
        %1861 = vmatpush2.msra.mxu0 0.0
        %1862 = vmatprep.subr.mxu0 0.0
        %1863 = vmatpush2.msra.mxu0 0.0
        %1864 = vmatprep.mubr.f32.mxu0 0.0
        %1865 = vmatmul.mubr.f32.gmra.mxu0 %v1798
        %v1866 = vpop.f32.mrf.mxu0
        %v1867 = vadd.f32 0.0, %v1866
        %v1868 = vpop.f32.mrf.mxu0
        %1869 = vdwg.mxu0
        %1871 = vrot.lane.b32.xlu0 %v1867, 96
        %v1872 = vpop.permute.xlu0 %1871
        %vm1874 = vcmask 917248
        %1875 = vst.msk [vmem:[#allocation2] sm:$0xff] %vm1874, %v1872
        %1876 = vrot.lane.b32.xlu0 %v497, 16
        %v1877 = vpop.permute.xlu0 %1876
        %1878 = vrot.lane.b32.xlu0 %v590, 16
        %v1879 = vpop.permute.xlu0 %1878
        %v1880 = vsel %vm686, %v1877, 0
        %v1882 = vsel %vm686, %v1879, 0
        %1884 = vmatprep.subr.mxu0 0.0
        %1885 = vmatpush1.xpose.msra.mxu0 0.0
        %1886 = vmatprep.subr.mxu0 0.0
        %1887 = vmatpush1.xpose.msra.mxu0 0.0
        %1888 = vmatprep.subr.mxu0 0.0
        %1889 = vmatpush1.xpose.msra.mxu0 0.0
        %1890 = vmatprep.subr.mxu0 0.0
        %1891 = vmatpush1.xpose.msra.mxu0 0.0
        %1892 = vmatprep.subr.mxu0 0.0
        %1893 = vmatpush1.xpose.msra.mxu0 0.0
        %1894 = vmatprep.subr.mxu0 0.0
        %1895 = vmatpush1.xpose.msra.mxu0 0.0
        %1896 = vmatprep.subr.mxu0 0.0
        %1897 = vmatpush1.xpose.msra.mxu0 0.0
        %1898 = vmatprep.subr.mxu0 0.0
        %1899 = vmatpush1.xpose.msra.mxu0 0.0
        %1900 = vmatprep.subr.mxu0 0.0
        %1901 = vmatpush1.xpose.msra.mxu0 0.0
        %1902 = vmatprep.subr.mxu0 0.0
        %1903 = vmatpush1.xpose.msra.mxu0 0.0
        %1904 = vmatprep.subr.mxu0 0.0
        %1905 = vmatpush1.xpose.msra.mxu0 0.0
        %1906 = vmatprep.subr.mxu0 0.0
        %1907 = vmatpush1.xpose.msra.mxu0 0.0
        %1908 = vmatprep.subr.mxu0 0.0
        %1909 = vmatpush1.xpose.msra.mxu0 0.0
        %1910 = vmatprep.subr.mxu0 0.0
        %1911 = vmatpush1.xpose.msra.mxu0 0.0
        %1912 = vmatprep.subr.mxu0 0.0
        %1913 = vmatpush1.xpose.msra.mxu0 0.0
        %1914 = vmatprep.subr.mxu0 0.0
        %1915 = vmatpush1.xpose.msra.mxu0 %v1882
        %1916 = vmatprep.subr.mxu0 0.0
        %1917 = vmatpush2.xpose.msra.mxu0 0.0
        %1918 = vmatprep.subr.mxu0 0.0
        %1919 = vmatpush2.xpose.msra.mxu0 0.0
        %1920 = vmatprep.subr.mxu0 0.0
        %1921 = vmatpush2.xpose.msra.mxu0 0.0
        %1922 = vmatprep.subr.mxu0 0.0
        %1923 = vmatpush2.xpose.msra.mxu0 0.0
        %1924 = vmatprep.subr.mxu0 0.0
        %1925 = vmatpush2.xpose.msra.mxu0 0.0
        %1926 = vmatprep.subr.mxu0 0.0
        %1927 = vmatpush2.xpose.msra.mxu0 0.0
        %1928 = vmatprep.subr.mxu0 0.0
        %1929 = vmatpush2.xpose.msra.mxu0 0.0
        %1930 = vmatprep.subr.mxu0 0.0
        %1931 = vmatpush2.xpose.msra.mxu0 0.0
        %1932 = vmatprep.subr.mxu0 0.0
        %1933 = vmatpush2.xpose.msra.mxu0 0.0
        %1934 = vmatprep.subr.mxu0 0.0
        %1935 = vmatpush2.xpose.msra.mxu0 0.0
        %1936 = vmatprep.subr.mxu0 0.0
        %1937 = vmatpush2.xpose.msra.mxu0 0.0
        %1938 = vmatprep.subr.mxu0 0.0
        %1939 = vmatpush2.xpose.msra.mxu0 0.0
        %1940 = vmatprep.subr.mxu0 0.0
        %1941 = vmatpush2.xpose.msra.mxu0 0.0
        %1942 = vmatprep.subr.mxu0 0.0
        %1943 = vmatpush2.xpose.msra.mxu0 0.0
        %1944 = vmatprep.subr.mxu0 0.0
        %1945 = vmatpush2.xpose.msra.mxu0 0.0
        %1946 = vmatprep.subr.mxu0 0.0
        %1947 = vmatpush2.xpose.msra.mxu0 0.0
        %1948 = vmatprep.mubr.f32.mxu0 0.0
        %1949 = vmatmul.mubr.f32.gmra.mxu0 %v1880
        %v1950 = vpop.f32.mrf.mxu0
        %v1951 = vadd.f32 0.0, %v1950
        %v1952 = vpop.f32.mrf.mxu0
        %1953 = vdwg.mxu0
        %v1954 = vsel %vm763, %v1951, -inf
        %1955 = vmax.xlane.f32.xlu0 %v1954
        %v1956 = vpop.xlane.xlu0 %1955
        %v1957 = vsub.f32 %v1951, %v1956
        %v1958 = vmul.f32 %v1957, 1.442695
        %v1959 = vpow.pop %v1958
        %v1960 = vsel %vm763, %v1959, 0.0
        %1961 = vadd.xlane.f32.xlu0 %v1960
        %v1962 = vpop.xlane.xlu0 %1961
        %v1963 = vrcp.pop %v1962
        %v1964 = vmul.f32 %v1959, %v1963
        %1965 = vrot.lane.b32.xlu0 %v683, 16
        %v1966 = vpop.permute.xlu0 %1965
        %v1969 = vsel %vm763, %v1964, 0
        %1971 = vmatprep.subr.mxu0 0.0
        %1972 = vmatpush1.msra.mxu0 0.0
        %1973 = vmatprep.subr.mxu0 0.0
        %1974 = vmatpush1.msra.mxu0 0.0
        %1975 = vmatprep.subr.mxu0 0.0
        %1976 = vmatpush1.msra.mxu0 0.0
        %1977 = vmatprep.subr.mxu0 0.0
        %1978 = vmatpush1.msra.mxu0 0.0
        %1979 = vmatprep.subr.mxu0 0.0
        %1980 = vmatpush1.msra.mxu0 0.0
        %1981 = vmatprep.subr.mxu0 0.0
        %1982 = vmatpush1.msra.mxu0 0.0
        %1983 = vmatprep.subr.mxu0 0.0
        %1984 = vmatpush1.msra.mxu0 0.0
        %1985 = vmatprep.subr.mxu0 0.0
        %1986 = vmatpush1.msra.mxu0 0.0
        %1987 = vmatprep.subr.mxu0 0.0
        %1988 = vmatpush1.msra.mxu0 0.0
        %1989 = vmatprep.subr.mxu0 0.0
        %1990 = vmatpush1.msra.mxu0 0.0
        %1991 = vmatprep.subr.mxu0 0.0
        %1992 = vmatpush1.msra.mxu0 0.0
        %1993 = vmatprep.subr.mxu0 0.0
        %1994 = vmatpush1.msra.mxu0 0.0
        %1995 = vmatprep.subr.mxu0 0.0
        %1996 = vmatpush1.msra.mxu0 0.0
        %1997 = vmatprep.subr.mxu0 0.0
        %1998 = vmatpush1.msra.mxu0 0.0
        %1999 = vmatprep.subr.mxu0 0.0
        %2000 = vmatpush1.msra.mxu0 0.0
        %2001 = vmatprep.subr.mxu0 0.0
        %2002 = vmatpush1.msra.mxu0 %v1966
        %2003 = vmatprep.subr.mxu0 0.0
        %2004 = vmatpush2.msra.mxu0 0.0
        %2005 = vmatprep.subr.mxu0 0.0
        %2006 = vmatpush2.msra.mxu0 0.0
        %2007 = vmatprep.subr.mxu0 0.0
        %2008 = vmatpush2.msra.mxu0 0.0
        %2009 = vmatprep.subr.mxu0 0.0
        %2010 = vmatpush2.msra.mxu0 0.0
        %2011 = vmatprep.subr.mxu0 0.0
        %2012 = vmatpush2.msra.mxu0 0.0
        %2013 = vmatprep.subr.mxu0 0.0
        %2014 = vmatpush2.msra.mxu0 0.0
        %2015 = vmatprep.subr.mxu0 0.0
        %2016 = vmatpush2.msra.mxu0 0.0
        %2017 = vmatprep.subr.mxu0 0.0
        %2018 = vmatpush2.msra.mxu0 0.0
        %2019 = vmatprep.subr.mxu0 0.0
        %2020 = vmatpush2.msra.mxu0 0.0
        %2021 = vmatprep.subr.mxu0 0.0
        %2022 = vmatpush2.msra.mxu0 0.0
        %2023 = vmatprep.subr.mxu0 0.0
        %2024 = vmatpush2.msra.mxu0 0.0
        %2025 = vmatprep.subr.mxu0 0.0
        %2026 = vmatpush2.msra.mxu0 0.0
        %2027 = vmatprep.subr.mxu0 0.0
        %2028 = vmatpush2.msra.mxu0 0.0
        %2029 = vmatprep.subr.mxu0 0.0
        %2030 = vmatpush2.msra.mxu0 0.0
        %2031 = vmatprep.subr.mxu0 0.0
        %2032 = vmatpush2.msra.mxu0 0.0
        %2033 = vmatprep.subr.mxu0 0.0
        %2034 = vmatpush2.msra.mxu0 0.0
        %2035 = vmatprep.mubr.f32.mxu0 0.0
        %2036 = vmatmul.mubr.f32.gmra.mxu0 %v1969
        %v2037 = vpop.f32.mrf.mxu0
        %v2038 = vadd.f32 0.0, %v2037
        %v2039 = vpop.f32.mrf.mxu0
        %2040 = vdwg.mxu0
        %2042 = vrot.lane.b32.xlu0 %v2038, 112
        %v2043 = vpop.permute.xlu0 %2042
        %vm2045 = vcmask 1048448
        %2046 = vst.msk [vmem:[#allocation2] sm:$0xff] %vm2045, %v2043
        %v2047 = vld [vmem:[#allocation2] sm:$0xff]
        %v2048 = vld [vmem:[#allocation11] sm:$0xff]
        %v2049 = vld [vmem:[#allocation11 + $0x8] sm:$0xff]
        %v2050 = vld [vmem:[#allocation11 + $0x10] sm:$0xff]
        %v2051 = vld [vmem:[#allocation11 + $0x18] sm:$0xff]
        %v2052 = vld [vmem:[#allocation11 + $0x20] sm:$0xff]
        %v2053 = vld [vmem:[#allocation11 + $0x28] sm:$0xff]
        %v2054 = vld [vmem:[#allocation11 + $0x30] sm:$0xff]
        %v2055 = vld [vmem:[#allocation11 + $0x38] sm:$0xff]
        %v2056 = vld [vmem:[#allocation11 + $0x40] sm:$0xff]
        %v2057 = vld [vmem:[#allocation11 + $0x48] sm:$0xff]
        %v2058 = vld [vmem:[#allocation11 + $0x50] sm:$0xff]
        %v2059 = vld [vmem:[#allocation11 + $0x58] sm:$0xff]
        %v2060 = vld [vmem:[#allocation11 + $0x60] sm:$0xff]
        %v2061 = vld [vmem:[#allocation11 + $0x68] sm:$0xff]
        %v2062 = vld [vmem:[#allocation11 + $0x70] sm:$0xff]
        %v2063 = vld [vmem:[#allocation11 + $0x78] sm:$0xff]
        %v2064 = vld [vmem:[%s8] sm:$0x1]
        %v2066 = vlaneseq
        %v2067 = vshrl.u32 %v2066, 7
        %v2068 = vsub.s32 0, %v2067
        %v2069 = vrot.slane %v2064, %v2068
        %2071 = vmatprep.subr.mxu0 0.0
        %2072 = vmatpush1.msra.mxu0 %v2063
        %2073 = vmatprep.subr.mxu0 0.0
        %2074 = vmatpush1.msra.mxu0 %v2062
        %2075 = vmatprep.subr.mxu0 0.0
        %2076 = vmatpush1.msra.mxu0 %v2061
        %2077 = vmatprep.subr.mxu0 0.0
        %2078 = vmatpush1.msra.mxu0 %v2060
        %2079 = vmatprep.subr.mxu0 0.0
        %2080 = vmatpush1.msra.mxu0 %v2059
        %2081 = vmatprep.subr.mxu0 0.0
        %2082 = vmatpush1.msra.mxu0 %v2058
        %2083 = vmatprep.subr.mxu0 0.0
        %2084 = vmatpush1.msra.mxu0 %v2057
        %2085 = vmatprep.subr.mxu0 0.0
        %2086 = vmatpush1.msra.mxu0 %v2056
        %2087 = vmatprep.subr.mxu0 0.0
        %2088 = vmatpush1.msra.mxu0 %v2055
        %2089 = vmatprep.subr.mxu0 0.0
        %2090 = vmatpush1.msra.mxu0 %v2054
        %2091 = vmatprep.subr.mxu0 0.0
        %2092 = vmatpush1.msra.mxu0 %v2053
        %2093 = vmatprep.subr.mxu0 0.0
        %2094 = vmatpush1.msra.mxu0 %v2052
        %2095 = vmatprep.subr.mxu0 0.0
        %2096 = vmatpush1.msra.mxu0 %v2051
        %2097 = vmatprep.subr.mxu0 0.0
        %2098 = vmatpush1.msra.mxu0 %v2050
        %2099 = vmatprep.subr.mxu0 0.0
        %2100 = vmatpush1.msra.mxu0 %v2049
        %2101 = vmatprep.subr.mxu0 0.0
        %2102 = vmatpush1.msra.mxu0 %v2048
        %2103 = vmatprep.subr.mxu0 0.0
        %2104 = vmatpush2.msra.mxu0 0.0
        %2105 = vmatprep.subr.mxu0 0.0
        %2106 = vmatpush2.msra.mxu0 0.0
        %2107 = vmatprep.subr.mxu0 0.0
        %2108 = vmatpush2.msra.mxu0 0.0
        %2109 = vmatprep.subr.mxu0 0.0
        %2110 = vmatpush2.msra.mxu0 0.0
        %2111 = vmatprep.subr.mxu0 0.0
        %2112 = vmatpush2.msra.mxu0 0.0
        %2113 = vmatprep.subr.mxu0 0.0
        %2114 = vmatpush2.msra.mxu0 0.0
        %2115 = vmatprep.subr.mxu0 0.0
        %2116 = vmatpush2.msra.mxu0 0.0
        %2117 = vmatprep.subr.mxu0 0.0
        %2118 = vmatpush2.msra.mxu0 0.0
        %2119 = vmatprep.subr.mxu0 0.0
        %2120 = vmatpush2.msra.mxu0 0.0
        %2121 = vmatprep.subr.mxu0 0.0
        %2122 = vmatpush2.msra.mxu0 0.0
        %2123 = vmatprep.subr.mxu0 0.0
        %2124 = vmatpush2.msra.mxu0 0.0
        %2125 = vmatprep.subr.mxu0 0.0
        %2126 = vmatpush2.msra.mxu0 0.0
        %2127 = vmatprep.subr.mxu0 0.0
        %2128 = vmatpush2.msra.mxu0 0.0
        %2129 = vmatprep.subr.mxu0 0.0
        %2130 = vmatpush2.msra.mxu0 0.0
        %2131 = vmatprep.subr.mxu0 0.0
        %2132 = vmatpush2.msra.mxu0 0.0
        %2133 = vmatprep.subr.mxu0 0.0
        %2134 = vmatpush2.msra.mxu0 0.0
        %2135 = vmatprep.mubr.f32.mxu0 0.0
        %2136 = vmatmul.mubr.f32.gmra.mxu0 %v2047
        %v2137 = vpop.f32.mrf.mxu0
        %v2138 = vadd.f32 %v2069, %v2137
        %v2139 = vpop.f32.mrf.mxu0
        %2140 = vdwg.mxu0
        %2141 = vst [vmem:[%s405] sm:$0xff] %v2138
        %s2142 = sand.u32 %s230, 1
        %s2143 = scalar_lea.sflag [#allocation5], %s2142
        %s2144 = sand.u32 %s230, 1
        %s2145 = smul.addr %s2144, 8
        %s2146 = scalar_lea.vmem [#allocation12], %s2145
        // Predicated region
        $region77: #{tpu_custom_call.1} parent=55 // pred_check
          %p2147 = pneg %p240
        $region78: #{tpu_custom_call.1} parent=55 // pred_check_branch
          %2149 = sbr.rel (%p2147) target = $region80
        $region79: #{tpu_custom_call.1} parent=55 // pred_region
          %s2151 = ssub.s32 128, 128
          %2152 = vsyncadd %s2143, %s2151
          %s2153 = smul.addr %s28, 128
          %s2154 = scalar_lea.hbm %s9, %s2153
          %s2156 = sshll.u32 %s2146, 4
          %s2157 = int_to_ptr.vmem [resolvable:$true] %s2156
          %2159 = dma.vmem_to_hbm [thread:$0]  %s2157, 128, %s2154, %s2143
        $region80: #{tpu_custom_call.1} parent=55 // pred_fallthru
          _
      $region56: #{tpu_custom_call.1} parent=5 // pred_fallthru
        _
      %p2160 = scmp.le.s32.totalorder 2, %s23
      // Predicated region
      $region81: #{tpu_custom_call.1} parent=5 // pred_check
        %p2161 = pneg %p2160
      $region82: #{tpu_custom_call.1} parent=5 // pred_check_branch
        %2163 = sbr.rel (%p2161) target = $region84
      $region83: #{tpu_custom_call.1} parent=5 // pred_region
        %s2164 = ssub.s32 %s23, 2
        // Predicated region
        $region85: #{tpu_custom_call.1} parent=83 // pred_check
          %p2165 = pneg %p246
        $region86: #{tpu_custom_call.1} parent=83 // pred_check_branch
          %2167 = sbr.rel (%p2165) target = $region88
        $region87: #{tpu_custom_call.1} parent=83 // pred_region
          %s2168 = sand.u32 %s231, 1
          %s2169 = scalar_lea.sflag [#allocation5], %s2168
          %s2170 = sand.u32 %s231, 1
          %s2171 = smul.addr %s2170, 8
          %s2172 = scalar_lea.vmem [#allocation12], %s2171
          %2173 = dma.done %s2169, 128
        $region88: #{tpu_custom_call.1} parent=83 // pred_fallthru
          _
      $region84: #{tpu_custom_call.1} parent=5 // pred_fallthru
        _
    $region6: #{tpu_custom_call.1} parent=1 // loop_footer
      %s27 = sadd.s32 1, %s23
    $region7: #{tpu_custom_call.1} parent=1 // loop_footer_branch
      %22 = sbr.rel target = $region3
    $region8: #{tpu_custom_call.1} parent=1 // loop_exit
      _
    %2174 = vsyncpa [#allocation4], 1
    %s2175 = scalar_lea.sflag [#allocation4], 1
    %2176 = vsyncpa %s2175, 1
    %2177 = vsyncpa [#allocation7], 1
    %2178 = vsyncpa [#allocation10], 1
    %2179 = vsyncpa [#allocation5], 1
    %s2180 = scalar_lea.sflag [#allocation5], 1
    %2181 = vsyncpa %s2180, 1

</llo_original>
